<compile_context>
chip_gen: v7x
topology: tpu7x:2x2x1
jax: 0.10.0
libtpu: 0.0.40
codegen_flags: <defaults>
</compile_context>

<pallas_src>
import jax
import jax.numpy as jnp
from jax import lax
from jax.experimental import pallas as pl
from jax.experimental.pallas import tpu as pltpu

HIDDEN = 16
OUT_CLASSES = 5
_FULL_UNROLL_MAX = 16   # fully unroll the recurrence for chunks up to this size
_FORI_UNROLL = 8        # unroll factor of the fori_loop recurrence otherwise


def _round_up(x, m):
    return ((x + m - 1) // m) * m


def _pack_params(params, input_size):
    """Pack all weights/biases into one (R, 16) f32 array (8-row sections).

    Row layout (Dp = round_up(input_size, 8)), all weights pre-transposed:
      [0,      Dp    )  W_ih_l0^T (rows [0, D) valid)
      [Dp,     Dp+16 )  W_hh_l0^T
      [Dp+16,  Dp+32 )  W_ih_l1^T
      [Dp+32,  Dp+48 )  W_hh_l1^T
      [Dp+48,  Dp+64 )  fc.0 W^T
      [Dp+64,  Dp+80 )  fc.2 W^T padded to 16 output columns (cols >=5 zero)
      Dp+80             b_ih_l0 + b_hh_l0
      Dp+81             b_ih_l1 + b_hh_l1
      Dp+82             fc.0 bias
      Dp+83             fc.2 bias padded to 16
    """
    H = HIDDEN
    D = input_size
    Dp = _round_up(D, 8)
    f32 = jnp.float32

    wih0 = jnp.zeros((Dp, H), f32).at[:D, :].set(params["w_ih_l0"].T.astype(f32))
    whh0 = params["w_hh_l0"].T.astype(f32)
    wih1 = params["w_ih_l1"].T.astype(f32)
    whh1 = params["w_hh_l1"].T.astype(f32)
    fcw1 = params["fc_w1"].T.astype(f32)
    fcw2 = jnp.zeros((H, H), f32).at[:, :OUT_CLASSES].set(params["fc_w2"].T.astype(f32))
    b0 = (params["b_ih_l0"] + params["b_hh_l0"]).astype(f32)[None, :]
    b1 = (params["b_ih_l1"] + params["b_hh_l1"]).astype(f32)[None, :]
    fcb1 = params["fc_b1"].astype(f32)[None, :]
    fcb2 = jnp.zeros((1, H), f32).at[0, :OUT_CLASSES].set(params["fc_b2"].astype(f32))

    packed = jnp.concatenate(
        [wih0, whh0, wih1, whh1, fcw1, fcw2, b0, b1, fcb1, fcb2], axis=0)
    R = packed.shape[0]
    Rp = _round_up(R, 8)
    if Rp != R:
        packed = jnp.concatenate([packed, jnp.zeros((Rp - R, H), f32)], axis=0)
    return packed


def _make_kernel(input_size):
    H = HIDDEN
    D = input_size
    Dp = _round_up(D, 8)
    r_whh0 = Dp
    r_wih1 = Dp + H
    r_whh1 = Dp + 2 * H
    r_fcw1 = Dp + 3 * H
    r_fcw2 = Dp + 4 * H
    r_b0 = Dp + 5 * H
    r_b1 = r_b0 + 1
    r_fcb1 = r_b0 + 2
    r_fcb2 = r_b0 + 3

    def kernel(x_ref, p_ref, out_ref, xp_ref, h0_ref, h1_ref):
        # x_ref: (Bb, Tt, D) time chunk, p_ref: (R, 16) packed params,
        # out_ref: (Bb, 5), xp_ref: (Bb, Tt, 16) hoisted projection scratch,
        # h0_ref/h1_ref: (Bb, 16) hidden state (persist across time chunks).
        Bb, Tt, _ = x_ref.shape
        t_chunk = pl.program_id(1)
        n_chunks = pl.num_programs(1)

        # h = 0 for both layers at the start of each batch block's time sweep.
        @pl.when(t_chunk == 0)
        def _():
            h0_ref[...] = jnp.zeros_like(h0_ref)
            h1_ref[...] = jnp.zeros_like(h1_ref)

        # One resident packed parameter block, sliced (statically) per chunk.
        wih0 = p_ref[0:D, :]                   # (D, 16)
        whh0 = p_ref[r_whh0:r_whh0 + H, :]     # (16, 16)
        wih1 = p_ref[r_wih1:r_wih1 + H, :]
        whh1 = p_ref[r_whh1:r_whh1 + H, :]
        b0 = p_ref[r_b0:r_b0 + 1, :]           # (1, 16) = b_ih_l0 + b_hh_l0
        b1 = p_ref[r_b1:r_b1 + 1, :]           # (1, 16) = b_ih_l1 + b_hh_l1

        # Hoisted, pre-broadcast biases (JAX does not CSE broadcast_in_dim).
        b0t = jnp.broadcast_to(b0, (Tt, H))
        b1b = jnp.broadcast_to(b1, (Bb, H))

        # ---- Chunk-level layer-0 input projection (off the serial chain). ---
        # One (Tt, D) @ (D, 16) matmul per batch row, instead of Tt tiny
        # contract-dim-D matmuls inside the recurrence.
        # TODO(synk): fuse into a single (Bb*Tt, D) matmul via a leading-dim
        # collapse for large Bb (needs an in-kernel relayout).
        for b in range(Bb):
            xp_ref[b] = (
                jnp.dot(x_ref[b], wih0, preferred_element_type=jnp.float32) + b0t
            )

        # ---- Serial recurrence: only dot(h, W_hh) + add + tanh per layer. ---
        def step(xp0, h0, h1):
            # Layer-1 W_hh term uses the previous h1 -> off the layer-0
            # critical path, schedules as filler.
            r1 = jnp.dot(h1, whh1, preferred_element_type=jnp.float32) + b1b
            h0 = jnp.tanh(xp0 + jnp.dot(h0, whh0,
                                        preferred_element_type=jnp.float32))
            # Inter-layer dropout (p=0.2) is identity in eval mode.
            h1 = jnp.tanh(r1 + jnp.dot(h0, wih1,
                                       preferred_element_type=jnp.float32))
            return h0, h1

        h0 = h0_ref[...]
        h1 = h1_ref[...]
        if Tt <= _FULL_UNROLL_MAX:
            # Short chunk: fully unrolled with static indices.
            for i in range(Tt):
                h0, h1 = step(xp_ref[:, i, :], h0, h1)
        else:
            # Long chunk: register-carried fori_loop with modest unroll keeps
            # LLO scheduling visibility while bounding vreg live ranges.
            def body(i, carry):
                return step(xp_ref[:, i, :], *carry)
            h0, h1 = lax.fori_loop(0, Tt, body, (h0, h1), unroll=_FORI_UNROLL)

        # Spill hidden state once per chunk (not per step) for the next chunk.
        h0_ref[...] = h0
        h1_ref[...] = h1

        # fc head on the last time-step of the top layer, final chunk only:
        # Linear(16,16) -> ReLU -> Linear(16,5); fc Dropout(0.1) is identity.
        @pl.when(t_chunk == n_chunks - 1)
        def _():
            fcw1 = p_ref[r_fcw1:r_fcw1 + H, :]
            fcb1 = p_ref[r_fcb1:r_fcb1 + 1, :]
            fcw2 = p_ref[r_fcw2:r_fcw2 + H, :]   # cols >= 5 are zero-padded
            fcb2 = p_ref[r_fcb2:r_fcb2 + 1, :]
            hfc = jnp.maximum(
                jnp.dot(h1, fcw1, preferred_element_type=jnp.float32) + fcb1, 0.0)
            y = jnp.dot(hfc, fcw2, preferred_element_type=jnp.float32) + fcb2
            out_ref[...] = y[:, :OUT_CLASSES].astype(out_ref.dtype)

    return kernel


def _default_num_batch_blocks(B):
    """2-way batch blocking on v7x (2 TensorCores/chip); 1 on v5e/v6e."""
    if B < 16 or (B // 2) % 8 != 0:
        return 1
    try:
        kind = jax.devices()[0].device_kind.lower()
    except Exception:
        return 1
    return 2 if ("v7" in kind or "7x" in kind) else 1


def _choose_time_block(T, Bb, D, target, vmem_budget=8 << 20):
    """Largest time chunk (divisor of T, multiple of 8 unless == T) whose
    padded-(8,128)-tile footprint (double-buffered x block + xp scratch) fits
    the budget.  Large chunks amortize the ~0.35us/grid-step overhead."""
    lanes_x = _round_up(D, 128)

    def footprint(tt):
        rows = _round_up(tt, 8)
        x_buf = Bb * rows * lanes_x * 4       # one x block buffer, padded
        xp_scr = Bb * rows * 128 * 4          # xp scratch (16 -> 128 lanes)
        return 2 * x_buf + xp_scr

    if T <= target and footprint(T) <= vmem_budget:
        return T
    best = None
    tt = 8
    while tt <= min(T, target):
        if T % tt == 0 and footprint(tt) <= vmem_budget:
            best = tt
        tt += 8
    return best if best is not None else T


def trajectory_rnn_forward(x, params, *, max_time_block=256, num_batch_blocks=None):
    """x: (B, T, D) float32, batch_first like the PyTorch module (eval mode)."""
    B, T, D = x.shape
    x = x.astype(jnp.float32)

    nb = _default_num_batch_blocks(B) if num_batch_blocks is None else num_batch_blocks
    if nb < 1 or B % nb != 0 or (nb > 1 and (B // nb) % 8 != 0):
        nb = 1
    Bb = B // nb

    Tt = _choose_time_block(T, Bb, D, max_time_block)
    n_t = T // Tt

    packed = _pack_params(params, D)
    R = packed.shape[0]

    in_specs = [
        pl.BlockSpec((Bb, Tt, D), lambda b, t: (b, t, 0)),
        # Whole packed-parameter block, constant index map: DMA'd once and
        # resident in VMEM for the entire grid.
        pl.BlockSpec((R, HIDDEN), lambda b, t: (0, 0)),
    ]
    out_spec = pl.BlockSpec((Bb, OUT_CLASSES), lambda b, t: (b, 0))

    # VMEM budget from padded (8,128)-tile footprints (raw element bytes
    # under-count the D=4 / H=16 lane padding by up to ~32x).
    lanes_x = _round_up(D, 128)
    rows_t = _round_up(Tt, 8)
    x_buf = Bb * rows_t * lanes_x * 4
    p_buf = _round_up(R, 8) * 128 * 4
    o_buf = _round_up(Bb, 8) * 128 * 4
    xp_scr = Bb * rows_t * 128 * 4
    h_scr = 2 * _round_up(Bb, 8) * 128 * 4
    vmem_needed = 2 * (x_buf + p_buf + o_buf) + xp_scr + h_scr
    vmem_limit = int(min(max(vmem_needed + (2 << 20), 16 << 20), 56 << 20))

    cost = pl.CostEstimate(
        flops=int(2 * B * T * (D * HIDDEN + 3 * HIDDEN * HIDDEN)
                  + 2 * B * (HIDDEN * HIDDEN + HIDDEN * OUT_CLASSES)),
        transcendentals=int(2 * B * T * HIDDEN),
        bytes_accessed=int(B * T * D * 4 + packed.size * 4 + B * OUT_CLASSES * 4),
    )

    grid_spec = pltpu.PrefetchScalarGridSpec(
        num_scalar_prefetch=0,
        grid=(nb, n_t),
        in_specs=in_specs,
        out_specs=out_spec,
        scratch_shapes=[
            pltpu.VMEM((Bb, Tt, HIDDEN), jnp.float32),   # hoisted x projection
            pltpu.VMEM((Bb, HIDDEN), jnp.float32),       # h layer 0
            pltpu.VMEM((Bb, HIDDEN), jnp.float32),       # h layer 1
        ],
    )

    return pl.pallas_call(
        _make_kernel(D),
        out_shape=jax.ShapeDtypeStruct((B, OUT_CLASSES), jnp.float32),
        grid_spec=grid_spec,
        compiler_params=pltpu.CompilerParams(
            dimension_semantics=("parallel", "arbitrary"),
            vmem_limit_bytes=vmem_limit,
        ),
        cost_estimate=cost,
    )(x, packed)


def init_params(key, input_size):
    """Deterministic init mirroring PyTorch's U(-1/sqrt(hidden), 1/sqrt(hidden))."""
    bound = 1.0 / jnp.sqrt(jnp.float32(HIDDEN))
    ks = jax.random.split(key, 12)

    def u(k, shape):
        return jax.random.uniform(k, shape, jnp.float32, -bound, bound)

    return {
        "w_ih_l0": u(ks[0], (HIDDEN, input_size)),
        "w_hh_l0": u(ks[1], (HIDDEN, HIDDEN)),
        "b_ih_l0": u(ks[2], (HIDDEN,)),
        "b_hh_l0": u(ks[3], (HIDDEN,)),
        "w_ih_l1": u(ks[4], (HIDDEN, HIDDEN)),
        "w_hh_l1": u(ks[5], (HIDDEN, HIDDEN)),
        "b_ih_l1": u(ks[6], (HIDDEN,)),
        "b_hh_l1": u(ks[7], (HIDDEN,)),
        "fc_w1": u(ks[8], (HIDDEN, HIDDEN)),
        "fc_b1": u(ks[9], (HIDDEN,)),
        "fc_w2": u(ks[10], (OUT_CLASSES, HIDDEN)),
        "fc_b2": u(ks[11], (OUT_CLASSES,)),
    }


def reference_forward(x, params):
    """Pure-JAX reference (eval-mode PyTorch semantics) for the sanity check."""
    B, T, D = x.shape
    h0 = jnp.zeros((B, HIDDEN), jnp.float32)
    h1 = jnp.zeros((B, HIDDEN), jnp.float32)
    for t in range(T):
        xt = x[:, t, :]
        h0 = jnp.tanh(xt @ params["w_ih_l0"].T + params["b_ih_l0"]
                      + h0 @ params["w_hh_l0"].T + params["b_hh_l0"])
        h1 = jnp.tanh(h0 @ params["w_ih_l1"].T + params["b_ih_l1"]
                      + h1 @ params["w_hh_l1"].T + params["b_hh_l1"])
    h = jnp.maximum(h1 @ params["fc_w1"].T + params["fc_b1"], 0.0)
    return h @ params["fc_w2"].T + params["fc_b2"]


if __name__ == "__main__":
    key = jax.random.PRNGKey(0)
    k_param, k_x = jax.random.split(key)

    batch, seq, input_size = 2, 8, 4
    params = init_params(k_param, input_size)
    x = jax.random.normal(k_x, (batch, seq, input_size), jnp.float32)

    out = trajectory_rnn_forward(x, params)
    out = jax.block_until_ready(out)

    ref = reference_forward(x, params)
    assert out.shape == (batch, OUT_CLASSES)
    assert jnp.allclose(out, ref, atol=1e-5, rtol=1e-5), (out, ref)

    print("KERNEL_OK")
</pallas_src>

<mosaic_0001>
module attributes {stable_mosaic.version = 11 : i64} {
  func.func @kernel(%arg0: i32, %arg1: i32, %arg2: memref<2x8x4xf32, #tpu.memory_space<vmem>>, %arg3: memref<96x16xf32, #tpu.memory_space<vmem>>, %arg4: memref<2x5xf32, #tpu.memory_space<vmem>>, %arg5: memref<2x8x16xf32, #tpu.memory_space<vmem>>, %arg6: memref<2x16xf32, #tpu.memory_space<vmem>>, %arg7: memref<2x16xf32, #tpu.memory_space<vmem>>) attributes {dimension_semantics = [#tpu.dimension_semantics<parallel>, #tpu.dimension_semantics<arbitrary>], iteration_bounds = array<i64: 1, 1>, scalar_prefetch = 0 : i64, scratch_operands = 3 : i64, tpu.core_type = #tpu.core_type<tc>, window_params = [{transform_indices = @transform_0, window_bounds = array<i64: 2, 8, 4>}, {pipeline_mode = #tpu.pipeline_mode<synchronous>, transform_indices = @transform_1, window_bounds = array<i64: 96, 16>}, {transform_indices = @transform_2, window_bounds = array<i64: 2, 5>}]} {
    %c0_i32 = arith.constant 0 : i32
    %0 = arith.cmpi eq, %arg1, %c0_i32 : i32
    %1 = arith.extui %0 : i1 to i32
    %c0_i32_0 = arith.constant 0 : i32
    %2 = arith.cmpi ne, %1, %c0_i32_0 : i32
    scf.if %2 {
      %cst_71 = arith.constant 0.000000e+00 : f32
      %114 = vector.broadcast %cst_71 : f32 to vector<2x16xf32>
      %c0_72 = arith.constant 0 : index
      %c0_73 = arith.constant 0 : index
      %115 = vector.load %arg6[%c0_72, %c0_73] : memref<2x16xf32, #tpu.memory_space<vmem>>, vector<2x16xf32>
      tpu.vector_store %arg6[%c0_72, %c0_73], %114 {strides = array<i32>} : memref<2x16xf32, #tpu.memory_space<vmem>>, vector<2x16xf32>,
      %cst_74 = arith.constant 0.000000e+00 : f32
      %116 = vector.broadcast %cst_74 : f32 to vector<2x16xf32>
      %c0_75 = arith.constant 0 : index
      %c0_76 = arith.constant 0 : index
      %117 = vector.load %arg7[%c0_75, %c0_76] : memref<2x16xf32, #tpu.memory_space<vmem>>, vector<2x16xf32>
      tpu.vector_store %arg7[%c0_75, %c0_76], %116 {strides = array<i32>} : memref<2x16xf32, #tpu.memory_space<vmem>>, vector<2x16xf32>,
    } else {
    }
    %c0 = arith.constant 0 : index
    %c0_1 = arith.constant 0 : index
    %3 = vector.load %arg3[%c0, %c0_1] : memref<96x16xf32, #tpu.memory_space<vmem>>, vector<4x16xf32>
    %c8 = arith.constant 8 : index
    %c0_2 = arith.constant 0 : index
    %4 = vector.load %arg3[%c8, %c0_2] : memref<96x16xf32, #tpu.memory_space<vmem>>, vector<16x16xf32>
    %c24 = arith.constant 24 : index
    %c0_3 = arith.constant 0 : index
    %5 = vector.load %arg3[%c24, %c0_3] : memref<96x16xf32, #tpu.memory_space<vmem>>, vector<16x16xf32>
    %c40 = arith.constant 40 : index
    %c0_4 = arith.constant 0 : index
    %6 = vector.load %arg3[%c40, %c0_4] : memref<96x16xf32, #tpu.memory_space<vmem>>, vector<16x16xf32>
    %c88 = arith.constant 88 : index
    %c0_5 = arith.constant 0 : index
    %7 = vector.load %arg3[%c88, %c0_5] : memref<96x16xf32, #tpu.memory_space<vmem>>, vector<1x16xf32>
    %c89 = arith.constant 89 : index
    %c0_6 = arith.constant 0 : index
    %8 = vector.load %arg3[%c89, %c0_6] : memref<96x16xf32, #tpu.memory_space<vmem>>, vector<1x16xf32>
    %9 = vector.shape_cast %7 : vector<1x16xf32> to vector<1x16xf32>
    %10 = vector.broadcast %9 : vector<1x16xf32> to vector<8x16xf32>
    %11 = vector.shape_cast %8 : vector<1x16xf32> to vector<1x16xf32>
    %12 = vector.broadcast %11 : vector<1x16xf32> to vector<2x16xf32>
    %c0_7 = arith.constant 0 : index
    %c0_8 = arith.constant 0 : index
    %c0_9 = arith.constant 0 : index
    %13 = vector.load %arg2[%c0_7, %c0_8, %c0_9] : memref<2x8x4xf32, #tpu.memory_space<vmem>>, vector<1x8x4xf32>
    %14 = vector.shape_cast %13 : vector<1x8x4xf32> to vector<8x4xf32>
    %cst = arith.constant dense<0.000000e+00> : vector<8x16xf32>
    %15 = tpu.matmul %14, %3, %cst {dimension_numbers = #tpu.dot_dimension_numbers<[1], [0], [0], [1], [0, 0, 1, 1], [], []>} : vector<8x4xf32>, vector<4x16xf32>, vector<8x16xf32> -> vector<8x16xf32>
    %16 = arith.addf %15, %10 : vector<8x16xf32>
    %c0_10 = arith.constant 0 : index
    %c0_11 = arith.constant 0 : index
    %c0_12 = arith.constant 0 : index
    %17 = vector.load %arg5[%c0_10, %c0_11, %c0_12] : memref<2x8x16xf32, #tpu.memory_space<vmem>>, vector<1x8x16xf32>
    %18 = vector.shape_cast %17 : vector<1x8x16xf32> to vector<8x16xf32>
    %19 = vector.shape_cast %16 : vector<8x16xf32> to vector<1x8x16xf32>
    tpu.vector_store %arg5[%c0_10, %c0_11, %c0_12], %19 {strides = array<i32>} : memref<2x8x16xf32, #tpu.memory_space<vmem>>, vector<1x8x16xf32>,
    %c1 = arith.constant 1 : index
    %c0_13 = arith.constant 0 : index
    %c0_14 = arith.constant 0 : index
    %20 = vector.load %arg2[%c1, %c0_13, %c0_14] : memref<2x8x4xf32, #tpu.memory_space<vmem>>, vector<1x8x4xf32>
    %21 = vector.shape_cast %20 : vector<1x8x4xf32> to vector<8x4xf32>
    %cst_15 = arith.constant dense<0.000000e+00> : vector<8x16xf32>
    %22 = tpu.matmul %21, %3, %cst_15 {dimension_numbers = #tpu.dot_dimension_numbers<[1], [0], [0], [1], [0, 0, 1, 1], [], []>} : vector<8x4xf32>, vector<4x16xf32>, vector<8x16xf32> -> vector<8x16xf32>
    %23 = arith.addf %22, %10 : vector<8x16xf32>
    %c1_16 = arith.constant 1 : index
    %c0_17 = arith.constant 0 : index
    %c0_18 = arith.constant 0 : index
    %24 = vector.load %arg5[%c1_16, %c0_17, %c0_18] : memref<2x8x16xf32, #tpu.memory_space<vmem>>, vector<1x8x16xf32>
    %25 = vector.shape_cast %24 : vector<1x8x16xf32> to vector<8x16xf32>
    %26 = vector.shape_cast %23 : vector<8x16xf32> to vector<1x8x16xf32>
    tpu.vector_store %arg5[%c1_16, %c0_17, %c0_18], %26 {strides = array<i32>} : memref<2x8x16xf32, #tpu.memory_space<vmem>>, vector<1x8x16xf32>,
    %c0_19 = arith.constant 0 : index
    %c0_20 = arith.constant 0 : index
    %27 = vector.load %arg6[%c0_19, %c0_20] : memref<2x16xf32, #tpu.memory_space<vmem>>, vector<2x16xf32>
    %c0_21 = arith.constant 0 : index
    %c0_22 = arith.constant 0 : index
    %28 = vector.load %arg7[%c0_21, %c0_22] : memref<2x16xf32, #tpu.memory_space<vmem>>, vector<2x16xf32>
    %c0_23 = arith.constant 0 : index
    %c0_24 = arith.constant 0 : index
    %c0_25 = arith.constant 0 : index
    %29 = vector.load %arg5[%c0_23, %c0_24, %c0_25] : memref<2x8x16xf32, #tpu.memory_space<vmem>>, vector<2x1x16xf32>
    %30 = vector.shape_cast %29 : vector<2x1x16xf32> to vector<2x16xf32>
    %cst_26 = arith.constant dense<0.000000e+00> : vector<2x16xf32>
    %31 = tpu.matmul %28, %6, %cst_26 {dimension_numbers = #tpu.dot_dimension_numbers<[1], [0], [0], [1], [0, 0, 1, 1], [], []>} : vector<2x16xf32>, vector<16x16xf32>, vector<2x16xf32> -> vector<2x16xf32>
    %32 = arith.addf %31, %12 : vector<2x16xf32>
    %cst_27 = arith.constant dense<0.000000e+00> : vector<2x16xf32>
    %33 = tpu.matmul %27, %4, %cst_27 {dimension_numbers = #tpu.dot_dimension_numbers<[1], [0], [0], [1], [0, 0, 1, 1], [], []>} : vector<2x16xf32>, vector<16x16xf32>, vector<2x16xf32> -> vector<2x16xf32>
    %34 = arith.addf %30, %33 : vector<2x16xf32>
    %35 = math.tanh %34 : vector<2x16xf32>
    %cst_28 = arith.constant dense<0.000000e+00> : vector<2x16xf32>
    %36 = tpu.matmul %35, %5, %cst_28 {dimension_numbers = #tpu.dot_dimension_numbers<[1], [0], [0], [1], [0, 0, 1, 1], [], []>} : vector<2x16xf32>, vector<16x16xf32>, vector<2x16xf32> -> vector<2x16xf32>
    %37 = arith.addf %32, %36 : vector<2x16xf32>
    %38 = math.tanh %37 : vector<2x16xf32>
    %c0_29 = arith.constant 0 : index
    %c1_30 = arith.constant 1 : index
    %c0_31 = arith.constant 0 : index
    %39 = vector.load %arg5[%c0_29, %c1_30, %c0_31] : memref<2x8x16xf32, #tpu.memory_space<vmem>>, vector<2x1x16xf32>
    %40 = vector.shape_cast %39 : vector<2x1x16xf32> to vector<2x16xf32>
    %cst_32 = arith.constant dense<0.000000e+00> : vector<2x16xf32>
    %41 = tpu.matmul %38, %6, %cst_32 {dimension_numbers = #tpu.dot_dimension_numbers<[1], [0], [0], [1], [0, 0, 1, 1], [], []>} : vector<2x16xf32>, vector<16x16xf32>, vector<2x16xf32> -> vector<2x16xf32>
    %42 = arith.addf %41, %12 : vector<2x16xf32>
    %cst_33 = arith.constant dense<0.000000e+00> : vector<2x16xf32>
    %43 = tpu.matmul %35, %4, %cst_33 {dimension_numbers = #tpu.dot_dimension_numbers<[1], [0], [0], [1], [0, 0, 1, 1], [], []>} : vector<2x16xf32>, vector<16x16xf32>, vector<2x16xf32> -> vector<2x16xf32>
    %44 = arith.addf %40, %43 : vector<2x16xf32>
    %45 = math.tanh %44 : vector<2x16xf32>
    %cst_34 = arith.constant dense<0.000000e+00> : vector<2x16xf32>
    %46 = tpu.matmul %45, %5, %cst_34 {dimension_numbers = #tpu.dot_dimension_numbers<[1], [0], [0], [1], [0, 0, 1, 1], [], []>} : vector<2x16xf32>, vector<16x16xf32>, vector<2x16xf32> -> vector<2x16xf32>
    %47 = arith.addf %42, %46 : vector<2x16xf32>
    %48 = math.tanh %47 : vector<2x16xf32>
    %c0_35 = arith.constant 0 : index
    %c2 = arith.constant 2 : index
    %c0_36 = arith.constant 0 : index
    %49 = vector.load %arg5[%c0_35, %c2, %c0_36] : memref<2x8x16xf32, #tpu.memory_space<vmem>>, vector<2x1x16xf32>
    %50 = vector.shape_cast %49 : vector<2x1x16xf32> to vector<2x16xf32>
    %cst_37 = arith.constant dense<0.000000e+00> : vector<2x16xf32>
    %51 = tpu.matmul %48, %6, %cst_37 {dimension_numbers = #tpu.dot_dimension_numbers<[1], [0], [0], [1], [0, 0, 1, 1], [], []>} : vector<2x16xf32>, vector<16x16xf32>, vector<2x16xf32> -> vector<2x16xf32>
    %52 = arith.addf %51, %12 : vector<2x16xf32>
    %cst_38 = arith.constant dense<0.000000e+00> : vector<2x16xf32>
    %53 = tpu.matmul %45, %4, %cst_38 {dimension_numbers = #tpu.dot_dimension_numbers<[1], [0], [0], [1], [0, 0, 1, 1], [], []>} : vector<2x16xf32>, vector<16x16xf32>, vector<2x16xf32> -> vector<2x16xf32>
    %54 = arith.addf %50, %53 : vector<2x16xf32>
    %55 = math.tanh %54 : vector<2x16xf32>
    %cst_39 = arith.constant dense<0.000000e+00> : vector<2x16xf32>
    %56 = tpu.matmul %55, %5, %cst_39 {dimension_numbers = #tpu.dot_dimension_numbers<[1], [0], [0], [1], [0, 0, 1, 1], [], []>} : vector<2x16xf32>, vector<16x16xf32>, vector<2x16xf32> -> vector<2x16xf32>
    %57 = arith.addf %52, %56 : vector<2x16xf32>
    %58 = math.tanh %57 : vector<2x16xf32>
    %c0_40 = arith.constant 0 : index
    %c3 = arith.constant 3 : index
    %c0_41 = arith.constant 0 : index
    %59 = vector.load %arg5[%c0_40, %c3, %c0_41] : memref<2x8x16xf32, #tpu.memory_space<vmem>>, vector<2x1x16xf32>
    %60 = vector.shape_cast %59 : vector<2x1x16xf32> to vector<2x16xf32>
    %cst_42 = arith.constant dense<0.000000e+00> : vector<2x16xf32>
    %61 = tpu.matmul %58, %6, %cst_42 {dimension_numbers = #tpu.dot_dimension_numbers<[1], [0], [0], [1], [0, 0, 1, 1], [], []>} : vector<2x16xf32>, vector<16x16xf32>, vector<2x16xf32> -> vector<2x16xf32>
    %62 = arith.addf %61, %12 : vector<2x16xf32>
    %cst_43 = arith.constant dense<0.000000e+00> : vector<2x16xf32>
    %63 = tpu.matmul %55, %4, %cst_43 {dimension_numbers = #tpu.dot_dimension_numbers<[1], [0], [0], [1], [0, 0, 1, 1], [], []>} : vector<2x16xf32>, vector<16x16xf32>, vector<2x16xf32> -> vector<2x16xf32>
    %64 = arith.addf %60, %63 : vector<2x16xf32>
    %65 = math.tanh %64 : vector<2x16xf32>
    %cst_44 = arith.constant dense<0.000000e+00> : vector<2x16xf32>
    %66 = tpu.matmul %65, %5, %cst_44 {dimension_numbers = #tpu.dot_dimension_numbers<[1], [0], [0], [1], [0, 0, 1, 1], [], []>} : vector<2x16xf32>, vector<16x16xf32>, vector<2x16xf32> -> vector<2x16xf32>
    %67 = arith.addf %62, %66 : vector<2x16xf32>
    %68 = math.tanh %67 : vector<2x16xf32>
    %c0_45 = arith.constant 0 : index
    %c4 = arith.constant 4 : index
    %c0_46 = arith.constant 0 : index
    %69 = vector.load %arg5[%c0_45, %c4, %c0_46] : memref<2x8x16xf32, #tpu.memory_space<vmem>>, vector<2x1x16xf32>
    %70 = vector.shape_cast %69 : vector<2x1x16xf32> to vector<2x16xf32>
    %cst_47 = arith.constant dense<0.000000e+00> : vector<2x16xf32>
    %71 = tpu.matmul %68, %6, %cst_47 {dimension_numbers = #tpu.dot_dimension_numbers<[1], [0], [0], [1], [0, 0, 1, 1], [], []>} : vector<2x16xf32>, vector<16x16xf32>, vector<2x16xf32> -> vector<2x16xf32>
    %72 = arith.addf %71, %12 : vector<2x16xf32>
    %cst_48 = arith.constant dense<0.000000e+00> : vector<2x16xf32>
    %73 = tpu.matmul %65, %4, %cst_48 {dimension_numbers = #tpu.dot_dimension_numbers<[1], [0], [0], [1], [0, 0, 1, 1], [], []>} : vector<2x16xf32>, vector<16x16xf32>, vector<2x16xf32> -> vector<2x16xf32>
    %74 = arith.addf %70, %73 : vector<2x16xf32>
    %75 = math.tanh %74 : vector<2x16xf32>
    %cst_49 = arith.constant dense<0.000000e+00> : vector<2x16xf32>
    %76 = tpu.matmul %75, %5, %cst_49 {dimension_numbers = #tpu.dot_dimension_numbers<[1], [0], [0], [1], [0, 0, 1, 1], [], []>} : vector<2x16xf32>, vector<16x16xf32>, vector<2x16xf32> -> vector<2x16xf32>
    %77 = arith.addf %72, %76 : vector<2x16xf32>
    %78 = math.tanh %77 : vector<2x16xf32>
    %c0_50 = arith.constant 0 : index
    %c5 = arith.constant 5 : index
    %c0_51 = arith.constant 0 : index
    %79 = vector.load %arg5[%c0_50, %c5, %c0_51] : memref<2x8x16xf32, #tpu.memory_space<vmem>>, vector<2x1x16xf32>
    %80 = vector.shape_cast %79 : vector<2x1x16xf32> to vector<2x16xf32>
    %cst_52 = arith.constant dense<0.000000e+00> : vector<2x16xf32>
    %81 = tpu.matmul %78, %6, %cst_52 {dimension_numbers = #tpu.dot_dimension_numbers<[1], [0], [0], [1], [0, 0, 1, 1], [], []>} : vector<2x16xf32>, vector<16x16xf32>, vector<2x16xf32> -> vector<2x16xf32>
    %82 = arith.addf %81, %12 : vector<2x16xf32>
    %cst_53 = arith.constant dense<0.000000e+00> : vector<2x16xf32>
    %83 = tpu.matmul %75, %4, %cst_53 {dimension_numbers = #tpu.dot_dimension_numbers<[1], [0], [0], [1], [0, 0, 1, 1], [], []>} : vector<2x16xf32>, vector<16x16xf32>, vector<2x16xf32> -> vector<2x16xf32>
    %84 = arith.addf %80, %83 : vector<2x16xf32>
    %85 = math.tanh %84 : vector<2x16xf32>
    %cst_54 = arith.constant dense<0.000000e+00> : vector<2x16xf32>
    %86 = tpu.matmul %85, %5, %cst_54 {dimension_numbers = #tpu.dot_dimension_numbers<[1], [0], [0], [1], [0, 0, 1, 1], [], []>} : vector<2x16xf32>, vector<16x16xf32>, vector<2x16xf32> -> vector<2x16xf32>
    %87 = arith.addf %82, %86 : vector<2x16xf32>
    %88 = math.tanh %87 : vector<2x16xf32>
    %c0_55 = arith.constant 0 : index
    %c6 = arith.constant 6 : index
    %c0_56 = arith.constant 0 : index
    %89 = vector.load %arg5[%c0_55, %c6, %c0_56] : memref<2x8x16xf32, #tpu.memory_space<vmem>>, vector<2x1x16xf32>
    %90 = vector.shape_cast %89 : vector<2x1x16xf32> to vector<2x16xf32>
    %cst_57 = arith.constant dense<0.000000e+00> : vector<2x16xf32>
    %91 = tpu.matmul %88, %6, %cst_57 {dimension_numbers = #tpu.dot_dimension_numbers<[1], [0], [0], [1], [0, 0, 1, 1], [], []>} : vector<2x16xf32>, vector<16x16xf32>, vector<2x16xf32> -> vector<2x16xf32>
    %92 = arith.addf %91, %12 : vector<2x16xf32>
    %cst_58 = arith.constant dense<0.000000e+00> : vector<2x16xf32>
    %93 = tpu.matmul %85, %4, %cst_58 {dimension_numbers = #tpu.dot_dimension_numbers<[1], [0], [0], [1], [0, 0, 1, 1], [], []>} : vector<2x16xf32>, vector<16x16xf32>, vector<2x16xf32> -> vector<2x16xf32>
    %94 = arith.addf %90, %93 : vector<2x16xf32>
    %95 = math.tanh %94 : vector<2x16xf32>
    %cst_59 = arith.constant dense<0.000000e+00> : vector<2x16xf32>
    %96 = tpu.matmul %95, %5, %cst_59 {dimension_numbers = #tpu.dot_dimension_numbers<[1], [0], [0], [1], [0, 0, 1, 1], [], []>} : vector<2x16xf32>, vector<16x16xf32>, vector<2x16xf32> -> vector<2x16xf32>
    %97 = arith.addf %92, %96 : vector<2x16xf32>
    %98 = math.tanh %97 : vector<2x16xf32>
    %c0_60 = arith.constant 0 : index
    %c7 = arith.constant 7 : index
    %c0_61 = arith.constant 0 : index
    %99 = vector.load %arg5[%c0_60, %c7, %c0_61] : memref<2x8x16xf32, #tpu.memory_space<vmem>>, vector<2x1x16xf32>
    %100 = vector.shape_cast %99 : vector<2x1x16xf32> to vector<2x16xf32>
    %cst_62 = arith.constant dense<0.000000e+00> : vector<2x16xf32>
    %101 = tpu.matmul %98, %6, %cst_62 {dimension_numbers = #tpu.dot_dimension_numbers<[1], [0], [0], [1], [0, 0, 1, 1], [], []>} : vector<2x16xf32>, vector<16x16xf32>, vector<2x16xf32> -> vector<2x16xf32>
    %102 = arith.addf %101, %12 : vector<2x16xf32>
    %cst_63 = arith.constant dense<0.000000e+00> : vector<2x16xf32>
    %103 = tpu.matmul %95, %4, %cst_63 {dimension_numbers = #tpu.dot_dimension_numbers<[1], [0], [0], [1], [0, 0, 1, 1], [], []>} : vector<2x16xf32>, vector<16x16xf32>, vector<2x16xf32> -> vector<2x16xf32>
    %104 = arith.addf %100, %103 : vector<2x16xf32>
    %105 = math.tanh %104 : vector<2x16xf32>
    %cst_64 = arith.constant dense<0.000000e+00> : vector<2x16xf32>
    %106 = tpu.matmul %105, %5, %cst_64 {dimension_numbers = #tpu.dot_dimension_numbers<[1], [0], [0], [1], [0, 0, 1, 1], [], []>} : vector<2x16xf32>, vector<16x16xf32>, vector<2x16xf32> -> vector<2x16xf32>
    %107 = arith.addf %102, %106 : vector<2x16xf32>
    %108 = math.tanh %107 : vector<2x16xf32>
    %c0_65 = arith.constant 0 : index
    %c0_66 = arith.constant 0 : index
    %109 = vector.load %arg6[%c0_65, %c0_66] : memref<2x16xf32, #tpu.memory_space<vmem>>, vector<2x16xf32>
    tpu.vector_store %arg6[%c0_65, %c0_66], %105 {strides = array<i32>} : memref<2x16xf32, #tpu.memory_space<vmem>>, vector<2x16xf32>,
    %c0_67 = arith.constant 0 : index
    %c0_68 = arith.constant 0 : index
    %110 = vector.load %arg7[%c0_67, %c0_68] : memref<2x16xf32, #tpu.memory_space<vmem>>, vector<2x16xf32>
    tpu.vector_store %arg7[%c0_67, %c0_68], %108 {strides = array<i32>} : memref<2x16xf32, #tpu.memory_space<vmem>>, vector<2x16xf32>,
    %c0_i32_69 = arith.constant 0 : i32
    %111 = arith.cmpi eq, %arg1, %c0_i32_69 : i32
    %112 = arith.extui %111 : i1 to i32
    %c0_i32_70 = arith.constant 0 : i32
    %113 = arith.cmpi ne, %112, %c0_i32_70 : i32
    scf.if %113 {
      %c56 = arith.constant 56 : index
      %c0_71 = arith.constant 0 : index
      %114 = vector.load %arg3[%c56, %c0_71] : memref<96x16xf32, #tpu.memory_space<vmem>>, vector<16x16xf32>
      %c90 = arith.constant 90 : index
      %c0_72 = arith.constant 0 : index
      %115 = vector.load %arg3[%c90, %c0_72] : memref<96x16xf32, #tpu.memory_space<vmem>>, vector<1x16xf32>
      %c72 = arith.constant 72 : index
      %c0_73 = arith.constant 0 : index
      %116 = vector.load %arg3[%c72, %c0_73] : memref<96x16xf32, #tpu.memory_space<vmem>>, vector<16x16xf32>
      %c91 = arith.constant 91 : index
      %c0_74 = arith.constant 0 : index
      %117 = vector.load %arg3[%c91, %c0_74] : memref<96x16xf32, #tpu.memory_space<vmem>>, vector<1x16xf32>
      %cst_75 = arith.constant dense<0.000000e+00> : vector<2x16xf32>
      %118 = tpu.matmul %108, %114, %cst_75 {dimension_numbers = #tpu.dot_dimension_numbers<[1], [0], [0], [1], [0, 0, 1, 1], [], []>} : vector<2x16xf32>, vector<16x16xf32>, vector<2x16xf32> -> vector<2x16xf32>
      %119 = vector.broadcast %115 : vector<1x16xf32> to vector<2x16xf32>
      %120 = arith.addf %118, %119 : vector<2x16xf32>
      %cst_76 = arith.constant 0.000000e+00 : f32
      %121 = vector.broadcast %cst_76 : f32 to vector<2x16xf32>
      %122 = arith.maximumf %120, %121 : vector<2x16xf32>
      %cst_77 = arith.constant dense<0.000000e+00> : vector<2x16xf32>
      %123 = tpu.matmul %122, %116, %cst_77 {dimension_numbers = #tpu.dot_dimension_numbers<[1], [0], [0], [1], [0, 0, 1, 1], [], []>} : vector<2x16xf32>, vector<16x16xf32>, vector<2x16xf32> -> vector<2x16xf32>
      %124 = vector.broadcast %117 : vector<1x16xf32> to vector<2x16xf32>
      %125 = arith.addf %123, %124 : vector<2x16xf32>
      %126 = vector.extract_strided_slice %125 {offsets = [0, 0], sizes = [2, 5], strides = [1, 1]} : vector<2x16xf32> to vector<2x5xf32>
      %c0_78 = arith.constant 0 : index
      %c0_79 = arith.constant 0 : index
      %127 = vector.load %arg4[%c0_78, %c0_79] : memref<2x5xf32, #tpu.memory_space<vmem>>, vector<2x5xf32>
      tpu.vector_store %arg4[%c0_78, %c0_79], %126 {strides = array<i32>} : memref<2x5xf32, #tpu.memory_space<vmem>>, vector<2x5xf32>,
    } else {
    }
    return
  }
  func.func @transform_0(%arg0: i32, %arg1: i32) -> (i32, i32, i32) {
    %c0_i32 = arith.constant 0 : i32
    %c0_i32_0 = arith.constant 0 : i32
    return %arg0, %arg1, %c0_i32 : i32, i32, i32
  }
  func.func @transform_1(%arg0: i32, %arg1: i32) -> (i32, i32) {
    %c0_i32 = arith.constant 0 : i32
    %c0_i32_0 = arith.constant 0 : i32
    %c0_i32_1 = arith.constant 0 : i32
    return %c0_i32, %c0_i32_0 : i32, i32
  }
  func.func @transform_2(%arg0: i32, %arg1: i32) -> (i32, i32) {
    %c0_i32 = arith.constant 0 : i32
    %c0_i32_0 = arith.constant 0 : i32
    return %arg0, %c0_i32 : i32, i32
  }
}

</mosaic_0001>

<llo_original>
// kernel: tpu_custom_call.1
$region0: #{tpu_custom_call.1}
  #allocation0 [shape = 'u32[]', space=smem, size = 0x4, offset = 0x4, fixed_abs, tag = 'smem constant byte address 0x4 - core index']
  #allocation1 [shape = 'u32[144,128]{1,0:T(1,128)}', space=vmem, size = 0x12000, scoped, tag = 'internal scratch']
  #allocation2 [shape = 'f32[2,8,16]{2,1,0:T(8,128)}', space=vmem, size = 0x2000, scoped, tag = 'scratch operand']
  #allocation3 [shape = 'f32[2,16]{1,0:T(2,128)}', space=vmem, size = 0x400, scoped, tag = 'scratch operand']
  #allocation4 [shape = 'f32[2,16]{1,0:T(2,128)}', space=vmem, size = 0x400, scoped, tag = 'scratch operand']
  %s0 = inlined_call_operand.vmem [shape: f32[2,8,4], index: 0, kind: input, shape index: {}]
  %s1 = inlined_call_operand.vmem [shape: f32[96,16], index: 1, kind: input, shape index: {}]
  %s2 = inlined_call_operand.hbm [shape: f32[2,5], index: 2, kind: output, shape index: {}]
  %s3 = sld [smem:[#allocation0]]
  $region26: #{tpu_custom_call.1} parent=0
    _
  %s5 = ssub.s32 1, %s3
  %s6 = scalar_select 0, %s5, %s3
  $region1: #{tpu_custom_call.1} parent=0
    #allocation5 [shape = 'u8[1024]{0}', space=vmem, size = 0x400, scoped, tag = 'output window, operand 0, single buffered']
    #allocation6 [shape = 's32[1]{0}', space=sflag, size = 0x4, scoped, tag = 'scoped memory for tpu_custom_call.1']
    %7 = vsyncpa [#allocation6], 0
    // Predicated region
    $region2: #{tpu_custom_call.1} parent=1 // pred_check
      _
    $region3: #{tpu_custom_call.1} parent=1 // pred_check_branch
      %9 = sbr.rel (0) target = $region5
    $region4: #{tpu_custom_call.1} parent=1 // pred_region
      _
    $region5: #{tpu_custom_call.1} parent=1 // pred_fallthru
      _
    // Predicated region
    $region6: #{tpu_custom_call.1} parent=1 // pred_check
      _
    $region7: #{tpu_custom_call.1} parent=1 // pred_check_branch
      %11 = sbr.rel (0) target = $region9
    $region8: #{tpu_custom_call.1} parent=1 // pred_region
      _
    $region9: #{tpu_custom_call.1} parent=1 // pred_fallthru
      _
    %p12 = scmp.eq.s32.totalorder 0, 0
    // Predicated region
    $region10: #{tpu_custom_call.1} parent=1 // pred_check
      %p13 = pneg %p12
    $region11: #{tpu_custom_call.1} parent=1 // pred_check_branch
      %15 = sbr.rel (%p13) target = $region13
    $region12: #{tpu_custom_call.1} parent=1 // pred_region
      %vm16 = vcmask 123904
      %17 = vst.msk [vmem:[#allocation3] sm:$0x3] %vm16, 0.0
      %18 = vst.msk [vmem:[#allocation4] sm:$0x3] %vm16, 0.0
    $region13: #{tpu_custom_call.1} parent=1 // pred_fallthru
      _
    %v19 = vld [vmem:[%s1] sm:$0xf]
    %v20 = vld [vmem:[%s1 + $0x8] sm:$0xff]
    %v21 = vld [vmem:[%s1 + $0x10] sm:$0xff]
    %v22 = vld [vmem:[%s1 + $0x18] sm:$0xff]
    %v23 = vld [vmem:[%s1 + $0x20] sm:$0xff]
    %v24 = vld [vmem:[%s1 + $0x28] sm:$0xff]
    %v25 = vld [vmem:[%s1 + $0x30] sm:$0xff]
    %v26 = vld [vmem:[%s1 + $0x58] sm:$0x1]
    %v27 = vld [vmem:[%s1 + $0x59] sm:$0x1]
    %v28 = vlaneseq
    %v29 = vshrl.u32 %v28, 7
    %v30 = vsub.s32 0, %v29
    %v31 = vrot.slane %v26, %v30
    %v32 = vlaneseq
    %v33 = vshrl.u32 %v32, 7
    %v34 = vsub.s32 0, %v33
    %v35 = vrot.slane %v27, %v34
    %v36 = vld [vmem:[%s0] sm:$0xff]
    %vm37 = vcmask 31744
    %v39 = vsel %vm37, %v36, 0
    %vm41 = vcmask 1043456
    %v43 = vsel %vm41, %v19, 0
    %45 = vmatprep.subr.mxu0 0.0
    %46 = vmatpush1.msra.mxu0 %v43
    %47 = vmatprep.subr.mxu0 0.0
    %48 = vmatpush1.msra.mxu0 0.0
    %49 = vmatprep.subr.mxu0 0.0
    %50 = vmatpush1.msra.mxu0 0.0
    %51 = vmatprep.subr.mxu0 0.0
    %52 = vmatpush1.msra.mxu0 0.0
    %53 = vmatprep.subr.mxu0 0.0
    %54 = vmatpush1.msra.mxu0 0.0
    %55 = vmatprep.subr.mxu0 0.0
    %56 = vmatpush1.msra.mxu0 0.0
    %57 = vmatprep.subr.mxu0 0.0
    %58 = vmatpush1.msra.mxu0 0.0
    %59 = vmatprep.subr.mxu0 0.0
    %60 = vmatpush1.msra.mxu0 0.0
    %61 = vmatprep.subr.mxu0 0.0
    %62 = vmatpush1.msra.mxu0 0.0
    %63 = vmatprep.subr.mxu0 0.0
    %64 = vmatpush1.msra.mxu0 0.0
    %65 = vmatprep.subr.mxu0 0.0
    %66 = vmatpush1.msra.mxu0 0.0
    %67 = vmatprep.subr.mxu0 0.0
    %68 = vmatpush1.msra.mxu0 0.0
    %69 = vmatprep.subr.mxu0 0.0
    %70 = vmatpush1.msra.mxu0 0.0
    %71 = vmatprep.subr.mxu0 0.0
    %72 = vmatpush1.msra.mxu0 0.0
    %73 = vmatprep.subr.mxu0 0.0
    %74 = vmatpush1.msra.mxu0 0.0
    %75 = vmatprep.subr.mxu0 0.0
    %76 = vmatpush1.msra.mxu0 0.0
    %77 = vmatprep.subr.mxu0 0.0
    %78 = vmatpush1.msra.mxu0 0.0
    %79 = vmatprep.subr.mxu0 0.0
    %80 = vmatpush1.msra.mxu0 0.0
    %81 = vmatprep.subr.mxu0 0.0
    %82 = vmatpush1.msra.mxu0 0.0
    %83 = vmatprep.subr.mxu0 0.0
    %84 = vmatpush1.msra.mxu0 0.0
    %85 = vmatprep.subr.mxu0 0.0
    %86 = vmatpush1.msra.mxu0 0.0
    %87 = vmatprep.subr.mxu0 0.0
    %88 = vmatpush1.msra.mxu0 0.0
    %89 = vmatprep.subr.mxu0 0.0
    %90 = vmatpush1.msra.mxu0 0.0
    %91 = vmatprep.subr.mxu0 0.0
    %92 = vmatpush1.msra.mxu0 0.0
    %93 = vmatprep.subr.mxu0 0.0
    %94 = vmatpush1.msra.mxu0 0.0
    %95 = vmatprep.subr.mxu0 0.0
    %96 = vmatpush1.msra.mxu0 0.0
    %97 = vmatprep.subr.mxu0 0.0
    %98 = vmatpush1.msra.mxu0 0.0
    %99 = vmatprep.subr.mxu0 0.0
    %100 = vmatpush1.msra.mxu0 0.0
    %101 = vmatprep.subr.mxu0 0.0
    %102 = vmatpush1.msra.mxu0 0.0
    %103 = vmatprep.subr.mxu0 0.0
    %104 = vmatpush1.msra.mxu0 0.0
    %105 = vmatprep.subr.mxu0 0.0
    %106 = vmatpush1.msra.mxu0 0.0
    %107 = vmatprep.subr.mxu0 0.0
    %108 = vmatpush1.msra.mxu0 0.0
    %109 = vmatprep.mubr.f32.mxu0 0.0
    %110 = vmatmul.mubr.f32.gmra.mrb[0].mxu0 %v39
    %v111 = vpop.f32.mrb[0].mxu0
    %v112 = vadd.f32 %v31, %v111
    %v113 = vpop.f32.mrb[0].mxu0
    %114 = vdwg.mxu0
    %vm115 = vcmask 130048
    %116 = vst.msk [vmem:[#allocation2] sm:$0xff] %vm115, %v112
    %s117 = scalar_lea.vmem %s0, 8
    %v118 = vld [vmem:[%s117] sm:$0xff]
    %v120 = vsel %vm37, %v118, 0
    %122 = vmatprep.subr.mxu0 0.0
    %123 = vmatpush1.msra.mxu0 %v43
    %124 = vmatprep.subr.mxu0 0.0
    %125 = vmatpush1.msra.mxu0 0.0
    %126 = vmatprep.subr.mxu0 0.0
    %127 = vmatpush1.msra.mxu0 0.0
    %128 = vmatprep.subr.mxu0 0.0
    %129 = vmatpush1.msra.mxu0 0.0
    %130 = vmatprep.subr.mxu0 0.0
    %131 = vmatpush1.msra.mxu0 0.0
    %132 = vmatprep.subr.mxu0 0.0
    %133 = vmatpush1.msra.mxu0 0.0
    %134 = vmatprep.subr.mxu0 0.0
    %135 = vmatpush1.msra.mxu0 0.0
    %136 = vmatprep.subr.mxu0 0.0
    %137 = vmatpush1.msra.mxu0 0.0
    %138 = vmatprep.subr.mxu0 0.0
    %139 = vmatpush1.msra.mxu0 0.0
    %140 = vmatprep.subr.mxu0 0.0
    %141 = vmatpush1.msra.mxu0 0.0
    %142 = vmatprep.subr.mxu0 0.0
    %143 = vmatpush1.msra.mxu0 0.0
    %144 = vmatprep.subr.mxu0 0.0
    %145 = vmatpush1.msra.mxu0 0.0
    %146 = vmatprep.subr.mxu0 0.0
    %147 = vmatpush1.msra.mxu0 0.0
    %148 = vmatprep.subr.mxu0 0.0
    %149 = vmatpush1.msra.mxu0 0.0
    %150 = vmatprep.subr.mxu0 0.0
    %151 = vmatpush1.msra.mxu0 0.0
    %152 = vmatprep.subr.mxu0 0.0
    %153 = vmatpush1.msra.mxu0 0.0
    %154 = vmatprep.subr.mxu0 0.0
    %155 = vmatpush1.msra.mxu0 0.0
    %156 = vmatprep.subr.mxu0 0.0
    %157 = vmatpush1.msra.mxu0 0.0
    %158 = vmatprep.subr.mxu0 0.0
    %159 = vmatpush1.msra.mxu0 0.0
    %160 = vmatprep.subr.mxu0 0.0
    %161 = vmatpush1.msra.mxu0 0.0
    %162 = vmatprep.subr.mxu0 0.0
    %163 = vmatpush1.msra.mxu0 0.0
    %164 = vmatprep.subr.mxu0 0.0
    %165 = vmatpush1.msra.mxu0 0.0
    %166 = vmatprep.subr.mxu0 0.0
    %167 = vmatpush1.msra.mxu0 0.0
    %168 = vmatprep.subr.mxu0 0.0
    %169 = vmatpush1.msra.mxu0 0.0
    %170 = vmatprep.subr.mxu0 0.0
    %171 = vmatpush1.msra.mxu0 0.0
    %172 = vmatprep.subr.mxu0 0.0
    %173 = vmatpush1.msra.mxu0 0.0
    %174 = vmatprep.subr.mxu0 0.0
    %175 = vmatpush1.msra.mxu0 0.0
    %176 = vmatprep.subr.mxu0 0.0
    %177 = vmatpush1.msra.mxu0 0.0
    %178 = vmatprep.subr.mxu0 0.0
    %179 = vmatpush1.msra.mxu0 0.0
    %180 = vmatprep.subr.mxu0 0.0
    %181 = vmatpush1.msra.mxu0 0.0
    %182 = vmatprep.subr.mxu0 0.0
    %183 = vmatpush1.msra.mxu0 0.0
    %184 = vmatprep.subr.mxu0 0.0
    %185 = vmatpush1.msra.mxu0 0.0
    %186 = vmatprep.mubr.f32.mxu0 0.0
    %187 = vmatmul.mubr.f32.gmra.mrb[0].mxu0 %v120
    %v188 = vpop.f32.mrb[0].mxu0
    %v189 = vadd.f32 %v31, %v188
    %v190 = vpop.f32.mrb[0].mxu0
    %191 = vdwg.mxu0
    %s192 = scalar_lea.vmem [#allocation2], 8
    %193 = vst.msk [vmem:[%s192] sm:$0xff] %vm115, %v189
    %v194 = vld [vmem:[#allocation3] sm:$0x3]
    %v195 = vld [vmem:[#allocation4] sm:$0x3]
    %v196 = vld [vmem:[#allocation2] sm:$0x1]
    %v197 = vld [vmem:[#allocation2 + $0x8] sm:$0x1]
    %v199 = vsel %vm115, %v195, 0
    %201 = vmatprep.subr.mxu0 0.0
    %202 = vmatpush1.msra.mxu0 %v24
    %203 = vmatprep.subr.mxu0 0.0
    %204 = vmatpush1.msra.mxu0 %v25
    %205 = vmatprep.subr.mxu0 0.0
    %206 = vmatpush1.msra.mxu0 0.0
    %207 = vmatprep.subr.mxu0 0.0
    %208 = vmatpush1.msra.mxu0 0.0
    %209 = vmatprep.subr.mxu0 0.0
    %210 = vmatpush1.msra.mxu0 0.0
    %211 = vmatprep.subr.mxu0 0.0
    %212 = vmatpush1.msra.mxu0 0.0
    %213 = vmatprep.subr.mxu0 0.0
    %214 = vmatpush1.msra.mxu0 0.0
    %215 = vmatprep.subr.mxu0 0.0
    %216 = vmatpush1.msra.mxu0 0.0
    %217 = vmatprep.subr.mxu0 0.0
    %218 = vmatpush1.msra.mxu0 0.0
    %219 = vmatprep.subr.mxu0 0.0
    %220 = vmatpush1.msra.mxu0 0.0
    %221 = vmatprep.subr.mxu0 0.0
    %222 = vmatpush1.msra.mxu0 0.0
    %223 = vmatprep.subr.mxu0 0.0
    %224 = vmatpush1.msra.mxu0 0.0
    %225 = vmatprep.subr.mxu0 0.0
    %226 = vmatpush1.msra.mxu0 0.0
    %227 = vmatprep.subr.mxu0 0.0
    %228 = vmatpush1.msra.mxu0 0.0
    %229 = vmatprep.subr.mxu0 0.0
    %230 = vmatpush1.msra.mxu0 0.0
    %231 = vmatprep.subr.mxu0 0.0
    %232 = vmatpush1.msra.mxu0 0.0
    %233 = vmatprep.subr.mxu0 0.0
    %234 = vmatpush1.msra.mxu0 0.0
    %235 = vmatprep.subr.mxu0 0.0
    %236 = vmatpush1.msra.mxu0 0.0
    %237 = vmatprep.subr.mxu0 0.0
    %238 = vmatpush1.msra.mxu0 0.0
    %239 = vmatprep.subr.mxu0 0.0
    %240 = vmatpush1.msra.mxu0 0.0
    %241 = vmatprep.subr.mxu0 0.0
    %242 = vmatpush1.msra.mxu0 0.0
    %243 = vmatprep.subr.mxu0 0.0
    %244 = vmatpush1.msra.mxu0 0.0
    %245 = vmatprep.subr.mxu0 0.0
    %246 = vmatpush1.msra.mxu0 0.0
    %247 = vmatprep.subr.mxu0 0.0
    %248 = vmatpush1.msra.mxu0 0.0
    %249 = vmatprep.subr.mxu0 0.0
    %250 = vmatpush1.msra.mxu0 0.0
    %251 = vmatprep.subr.mxu0 0.0
    %252 = vmatpush1.msra.mxu0 0.0
    %253 = vmatprep.subr.mxu0 0.0
    %254 = vmatpush1.msra.mxu0 0.0
    %255 = vmatprep.subr.mxu0 0.0
    %256 = vmatpush1.msra.mxu0 0.0
    %257 = vmatprep.subr.mxu0 0.0
    %258 = vmatpush1.msra.mxu0 0.0
    %259 = vmatprep.subr.mxu0 0.0
    %260 = vmatpush1.msra.mxu0 0.0
    %261 = vmatprep.subr.mxu0 0.0
    %262 = vmatpush1.msra.mxu0 0.0
    %263 = vmatprep.subr.mxu0 0.0
    %264 = vmatpush1.msra.mxu0 0.0
    %265 = vmatprep.mubr.f32.mxu0 0.0
    %266 = vmatmul.mubr.f32.gmra.mrb[0].mxu0 %v199
    %v267 = vpop.f32.mrb[0].mxu0
    %v268 = vadd.f32 %v35, %v267
    %v269 = vpop.f32.mrb[0].mxu0
    %270 = vdwg.mxu0
    %v272 = vsel %vm115, %v194, 0
    %274 = vmatprep.subr.mxu0 0.0
    %275 = vmatpush1.msra.mxu0 %v20
    %276 = vmatprep.subr.mxu0 0.0
    %277 = vmatpush1.msra.mxu0 %v21
    %278 = vmatprep.subr.mxu0 0.0
    %279 = vmatpush1.msra.mxu0 0.0
    %280 = vmatprep.subr.mxu0 0.0
    %281 = vmatpush1.msra.mxu0 0.0
    %282 = vmatprep.subr.mxu0 0.0
    %283 = vmatpush1.msra.mxu0 0.0
    %284 = vmatprep.subr.mxu0 0.0
    %285 = vmatpush1.msra.mxu0 0.0
    %286 = vmatprep.subr.mxu0 0.0
    %287 = vmatpush1.msra.mxu0 0.0
    %288 = vmatprep.subr.mxu0 0.0
    %289 = vmatpush1.msra.mxu0 0.0
    %290 = vmatprep.subr.mxu0 0.0
    %291 = vmatpush1.msra.mxu0 0.0
    %292 = vmatprep.subr.mxu0 0.0
    %293 = vmatpush1.msra.mxu0 0.0
    %294 = vmatprep.subr.mxu0 0.0
    %295 = vmatpush1.msra.mxu0 0.0
    %296 = vmatprep.subr.mxu0 0.0
    %297 = vmatpush1.msra.mxu0 0.0
    %298 = vmatprep.subr.mxu0 0.0
    %299 = vmatpush1.msra.mxu0 0.0
    %300 = vmatprep.subr.mxu0 0.0
    %301 = vmatpush1.msra.mxu0 0.0
    %302 = vmatprep.subr.mxu0 0.0
    %303 = vmatpush1.msra.mxu0 0.0
    %304 = vmatprep.subr.mxu0 0.0
    %305 = vmatpush1.msra.mxu0 0.0
    %306 = vmatprep.subr.mxu0 0.0
    %307 = vmatpush1.msra.mxu0 0.0
    %308 = vmatprep.subr.mxu0 0.0
    %309 = vmatpush1.msra.mxu0 0.0
    %310 = vmatprep.subr.mxu0 0.0
    %311 = vmatpush1.msra.mxu0 0.0
    %312 = vmatprep.subr.mxu0 0.0
    %313 = vmatpush1.msra.mxu0 0.0
    %314 = vmatprep.subr.mxu0 0.0
    %315 = vmatpush1.msra.mxu0 0.0
    %316 = vmatprep.subr.mxu0 0.0
    %317 = vmatpush1.msra.mxu0 0.0
    %318 = vmatprep.subr.mxu0 0.0
    %319 = vmatpush1.msra.mxu0 0.0
    %320 = vmatprep.subr.mxu0 0.0
    %321 = vmatpush1.msra.mxu0 0.0
    %322 = vmatprep.subr.mxu0 0.0
    %323 = vmatpush1.msra.mxu0 0.0
    %324 = vmatprep.subr.mxu0 0.0
    %325 = vmatpush1.msra.mxu0 0.0
    %326 = vmatprep.subr.mxu0 0.0
    %327 = vmatpush1.msra.mxu0 0.0
    %328 = vmatprep.subr.mxu0 0.0
    %329 = vmatpush1.msra.mxu0 0.0
    %330 = vmatprep.subr.mxu0 0.0
    %331 = vmatpush1.msra.mxu0 0.0
    %332 = vmatprep.subr.mxu0 0.0
    %333 = vmatpush1.msra.mxu0 0.0
    %334 = vmatprep.subr.mxu0 0.0
    %335 = vmatpush1.msra.mxu0 0.0
    %336 = vmatprep.subr.mxu0 0.0
    %337 = vmatpush1.msra.mxu0 0.0
    %338 = vmatprep.mubr.f32.mxu0 0.0
    %339 = vmatmul.mubr.f32.gmra.mrb[0].mxu0 %v272
    %v340 = vpop.f32.mrb[0].mxu0
    %v341 = vadd.f32 0.0, %v340
    %v342 = vpop.f32.mrb[0].mxu0
    %343 = vdwg.mxu0
    %v345 = vrot.slane %v341, 1
    %v348 = vadd.f32 %v196, %v341
    %v349 = vadd.f32 %v197, %v345
    %v350 = vtanh.pop %v348
    %v351 = vtanh.pop %v349
    %v354 = vrot.slane %v351, 7
    %vm355 = vcmask 1041409
    %v356 = vsel %vm355, %v354, %v350
    %v357 = vsel %vm115, %v356, 0
    %359 = vmatprep.subr.mxu0 0.0
    %360 = vmatpush1.msra.mxu0 %v22
    %361 = vmatprep.subr.mxu0 0.0
    %362 = vmatpush1.msra.mxu0 %v23
    %363 = vmatprep.subr.mxu0 0.0
    %364 = vmatpush1.msra.mxu0 0.0
    %365 = vmatprep.subr.mxu0 0.0
    %366 = vmatpush1.msra.mxu0 0.0
    %367 = vmatprep.subr.mxu0 0.0
    %368 = vmatpush1.msra.mxu0 0.0
    %369 = vmatprep.subr.mxu0 0.0
    %370 = vmatpush1.msra.mxu0 0.0
    %371 = vmatprep.subr.mxu0 0.0
    %372 = vmatpush1.msra.mxu0 0.0
    %373 = vmatprep.subr.mxu0 0.0
    %374 = vmatpush1.msra.mxu0 0.0
    %375 = vmatprep.subr.mxu0 0.0
    %376 = vmatpush1.msra.mxu0 0.0
    %377 = vmatprep.subr.mxu0 0.0
    %378 = vmatpush1.msra.mxu0 0.0
    %379 = vmatprep.subr.mxu0 0.0
    %380 = vmatpush1.msra.mxu0 0.0
    %381 = vmatprep.subr.mxu0 0.0
    %382 = vmatpush1.msra.mxu0 0.0
    %383 = vmatprep.subr.mxu0 0.0
    %384 = vmatpush1.msra.mxu0 0.0
    %385 = vmatprep.subr.mxu0 0.0
    %386 = vmatpush1.msra.mxu0 0.0
    %387 = vmatprep.subr.mxu0 0.0
    %388 = vmatpush1.msra.mxu0 0.0
    %389 = vmatprep.subr.mxu0 0.0
    %390 = vmatpush1.msra.mxu0 0.0
    %391 = vmatprep.subr.mxu0 0.0
    %392 = vmatpush1.msra.mxu0 0.0
    %393 = vmatprep.subr.mxu0 0.0
    %394 = vmatpush1.msra.mxu0 0.0
    %395 = vmatprep.subr.mxu0 0.0
    %396 = vmatpush1.msra.mxu0 0.0
    %397 = vmatprep.subr.mxu0 0.0
    %398 = vmatpush1.msra.mxu0 0.0
    %399 = vmatprep.subr.mxu0 0.0
    %400 = vmatpush1.msra.mxu0 0.0
    %401 = vmatprep.subr.mxu0 0.0
    %402 = vmatpush1.msra.mxu0 0.0
    %403 = vmatprep.subr.mxu0 0.0
    %404 = vmatpush1.msra.mxu0 0.0
    %405 = vmatprep.subr.mxu0 0.0
    %406 = vmatpush1.msra.mxu0 0.0
    %407 = vmatprep.subr.mxu0 0.0
    %408 = vmatpush1.msra.mxu0 0.0
    %409 = vmatprep.subr.mxu0 0.0
    %410 = vmatpush1.msra.mxu0 0.0
    %411 = vmatprep.subr.mxu0 0.0
    %412 = vmatpush1.msra.mxu0 0.0
    %413 = vmatprep.subr.mxu0 0.0
    %414 = vmatpush1.msra.mxu0 0.0
    %415 = vmatprep.subr.mxu0 0.0
    %416 = vmatpush1.msra.mxu0 0.0
    %417 = vmatprep.subr.mxu0 0.0
    %418 = vmatpush1.msra.mxu0 0.0
    %419 = vmatprep.subr.mxu0 0.0
    %420 = vmatpush1.msra.mxu0 0.0
    %421 = vmatprep.subr.mxu0 0.0
    %422 = vmatpush1.msra.mxu0 0.0
    %423 = vmatprep.mubr.f32.mxu0 0.0
    %424 = vmatmul.mubr.f32.gmra.mrb[0].mxu0 %v357
    %v425 = vpop.f32.mrb[0].mxu0
    %v426 = vadd.f32 0.0, %v425
    %v427 = vpop.f32.mrb[0].mxu0
    %428 = vdwg.mxu0
    %v429 = vadd.f32 %v268, %v426
    %v430 = vtanh.pop %v429
    %v431 = vld [vmem:[#allocation2 + $0x1] sm:$0x1]
    %v432 = vld [vmem:[#allocation2 + $0x9] sm:$0x1]
    %v434 = vsel %vm115, %v430, 0
    %436 = vmatprep.subr.mxu0 0.0
    %437 = vmatpush1.msra.mxu0 %v24
    %438 = vmatprep.subr.mxu0 0.0
    %439 = vmatpush1.msra.mxu0 %v25
    %440 = vmatprep.subr.mxu0 0.0
    %441 = vmatpush1.msra.mxu0 0.0
    %442 = vmatprep.subr.mxu0 0.0
    %443 = vmatpush1.msra.mxu0 0.0
    %444 = vmatprep.subr.mxu0 0.0
    %445 = vmatpush1.msra.mxu0 0.0
    %446 = vmatprep.subr.mxu0 0.0
    %447 = vmatpush1.msra.mxu0 0.0
    %448 = vmatprep.subr.mxu0 0.0
    %449 = vmatpush1.msra.mxu0 0.0
    %450 = vmatprep.subr.mxu0 0.0
    %451 = vmatpush1.msra.mxu0 0.0
    %452 = vmatprep.subr.mxu0 0.0
    %453 = vmatpush1.msra.mxu0 0.0
    %454 = vmatprep.subr.mxu0 0.0
    %455 = vmatpush1.msra.mxu0 0.0
    %456 = vmatprep.subr.mxu0 0.0
    %457 = vmatpush1.msra.mxu0 0.0
    %458 = vmatprep.subr.mxu0 0.0
    %459 = vmatpush1.msra.mxu0 0.0
    %460 = vmatprep.subr.mxu0 0.0
    %461 = vmatpush1.msra.mxu0 0.0
    %462 = vmatprep.subr.mxu0 0.0
    %463 = vmatpush1.msra.mxu0 0.0
    %464 = vmatprep.subr.mxu0 0.0
    %465 = vmatpush1.msra.mxu0 0.0
    %466 = vmatprep.subr.mxu0 0.0
    %467 = vmatpush1.msra.mxu0 0.0
    %468 = vmatprep.subr.mxu0 0.0
    %469 = vmatpush1.msra.mxu0 0.0
    %470 = vmatprep.subr.mxu0 0.0
    %471 = vmatpush1.msra.mxu0 0.0
    %472 = vmatprep.subr.mxu0 0.0
    %473 = vmatpush1.msra.mxu0 0.0
    %474 = vmatprep.subr.mxu0 0.0
    %475 = vmatpush1.msra.mxu0 0.0
    %476 = vmatprep.subr.mxu0 0.0
    %477 = vmatpush1.msra.mxu0 0.0
    %478 = vmatprep.subr.mxu0 0.0
    %479 = vmatpush1.msra.mxu0 0.0
    %480 = vmatprep.subr.mxu0 0.0
    %481 = vmatpush1.msra.mxu0 0.0
    %482 = vmatprep.subr.mxu0 0.0
    %483 = vmatpush1.msra.mxu0 0.0
    %484 = vmatprep.subr.mxu0 0.0
    %485 = vmatpush1.msra.mxu0 0.0
    %486 = vmatprep.subr.mxu0 0.0
    %487 = vmatpush1.msra.mxu0 0.0
    %488 = vmatprep.subr.mxu0 0.0
    %489 = vmatpush1.msra.mxu0 0.0
    %490 = vmatprep.subr.mxu0 0.0
    %491 = vmatpush1.msra.mxu0 0.0
    %492 = vmatprep.subr.mxu0 0.0
    %493 = vmatpush1.msra.mxu0 0.0
    %494 = vmatprep.subr.mxu0 0.0
    %495 = vmatpush1.msra.mxu0 0.0
    %496 = vmatprep.subr.mxu0 0.0
    %497 = vmatpush1.msra.mxu0 0.0
    %498 = vmatprep.subr.mxu0 0.0
    %499 = vmatpush1.msra.mxu0 0.0
    %500 = vmatprep.mubr.f32.mxu0 0.0
    %501 = vmatmul.mubr.f32.gmra.mrb[0].mxu0 %v434
    %v502 = vpop.f32.mrb[0].mxu0
    %v503 = vadd.f32 %v35, %v502
    %v504 = vpop.f32.mrb[0].mxu0
    %505 = vdwg.mxu0
    %506 = vmatprep.subr.mxu0 0.0
    %507 = vmatpush1.msra.mxu0 %v20
    %508 = vmatprep.subr.mxu0 0.0
    %509 = vmatpush1.msra.mxu0 %v21
    %510 = vmatprep.subr.mxu0 0.0
    %511 = vmatpush1.msra.mxu0 0.0
    %512 = vmatprep.subr.mxu0 0.0
    %513 = vmatpush1.msra.mxu0 0.0
    %514 = vmatprep.subr.mxu0 0.0
    %515 = vmatpush1.msra.mxu0 0.0
    %516 = vmatprep.subr.mxu0 0.0
    %517 = vmatpush1.msra.mxu0 0.0
    %518 = vmatprep.subr.mxu0 0.0
    %519 = vmatpush1.msra.mxu0 0.0
    %520 = vmatprep.subr.mxu0 0.0
    %521 = vmatpush1.msra.mxu0 0.0
    %522 = vmatprep.subr.mxu0 0.0
    %523 = vmatpush1.msra.mxu0 0.0
    %524 = vmatprep.subr.mxu0 0.0
    %525 = vmatpush1.msra.mxu0 0.0
    %526 = vmatprep.subr.mxu0 0.0
    %527 = vmatpush1.msra.mxu0 0.0
    %528 = vmatprep.subr.mxu0 0.0
    %529 = vmatpush1.msra.mxu0 0.0
    %530 = vmatprep.subr.mxu0 0.0
    %531 = vmatpush1.msra.mxu0 0.0
    %532 = vmatprep.subr.mxu0 0.0
    %533 = vmatpush1.msra.mxu0 0.0
    %534 = vmatprep.subr.mxu0 0.0
    %535 = vmatpush1.msra.mxu0 0.0
    %536 = vmatprep.subr.mxu0 0.0
    %537 = vmatpush1.msra.mxu0 0.0
    %538 = vmatprep.subr.mxu0 0.0
    %539 = vmatpush1.msra.mxu0 0.0
    %540 = vmatprep.subr.mxu0 0.0
    %541 = vmatpush1.msra.mxu0 0.0
    %542 = vmatprep.subr.mxu0 0.0
    %543 = vmatpush1.msra.mxu0 0.0
    %544 = vmatprep.subr.mxu0 0.0
    %545 = vmatpush1.msra.mxu0 0.0
    %546 = vmatprep.subr.mxu0 0.0
    %547 = vmatpush1.msra.mxu0 0.0
    %548 = vmatprep.subr.mxu0 0.0
    %549 = vmatpush1.msra.mxu0 0.0
    %550 = vmatprep.subr.mxu0 0.0
    %551 = vmatpush1.msra.mxu0 0.0
    %552 = vmatprep.subr.mxu0 0.0
    %553 = vmatpush1.msra.mxu0 0.0
    %554 = vmatprep.subr.mxu0 0.0
    %555 = vmatpush1.msra.mxu0 0.0
    %556 = vmatprep.subr.mxu0 0.0
    %557 = vmatpush1.msra.mxu0 0.0
    %558 = vmatprep.subr.mxu0 0.0
    %559 = vmatpush1.msra.mxu0 0.0
    %560 = vmatprep.subr.mxu0 0.0
    %561 = vmatpush1.msra.mxu0 0.0
    %562 = vmatprep.subr.mxu0 0.0
    %563 = vmatpush1.msra.mxu0 0.0
    %564 = vmatprep.subr.mxu0 0.0
    %565 = vmatpush1.msra.mxu0 0.0
    %566 = vmatprep.subr.mxu0 0.0
    %567 = vmatpush1.msra.mxu0 0.0
    %568 = vmatprep.subr.mxu0 0.0
    %569 = vmatpush1.msra.mxu0 0.0
    %570 = vmatprep.mubr.f32.mxu0 0.0
    %571 = vmatmul.mubr.f32.gmra.mrb[0].mxu0 %v357
    %v572 = vpop.f32.mrb[0].mxu0
    %v573 = vadd.f32 0.0, %v572
    %v574 = vpop.f32.mrb[0].mxu0
    %575 = vdwg.mxu0
    %v577 = vrot.slane %v573, 1
    %v580 = vadd.f32 %v431, %v573
    %v581 = vadd.f32 %v432, %v577
    %v582 = vtanh.pop %v580
    %v583 = vtanh.pop %v581
    %v586 = vrot.slane %v583, 7
    %v587 = vsel %vm355, %v586, %v582
    %v588 = vsel %vm115, %v587, 0
    %590 = vmatprep.subr.mxu0 0.0
    %591 = vmatpush1.msra.mxu0 %v22
    %592 = vmatprep.subr.mxu0 0.0
    %593 = vmatpush1.msra.mxu0 %v23
    %594 = vmatprep.subr.mxu0 0.0
    %595 = vmatpush1.msra.mxu0 0.0
    %596 = vmatprep.subr.mxu0 0.0
    %597 = vmatpush1.msra.mxu0 0.0
    %598 = vmatprep.subr.mxu0 0.0
    %599 = vmatpush1.msra.mxu0 0.0
    %600 = vmatprep.subr.mxu0 0.0
    %601 = vmatpush1.msra.mxu0 0.0
    %602 = vmatprep.subr.mxu0 0.0
    %603 = vmatpush1.msra.mxu0 0.0
    %604 = vmatprep.subr.mxu0 0.0
    %605 = vmatpush1.msra.mxu0 0.0
    %606 = vmatprep.subr.mxu0 0.0
    %607 = vmatpush1.msra.mxu0 0.0
    %608 = vmatprep.subr.mxu0 0.0
    %609 = vmatpush1.msra.mxu0 0.0
    %610 = vmatprep.subr.mxu0 0.0
    %611 = vmatpush1.msra.mxu0 0.0
    %612 = vmatprep.subr.mxu0 0.0
    %613 = vmatpush1.msra.mxu0 0.0
    %614 = vmatprep.subr.mxu0 0.0
    %615 = vmatpush1.msra.mxu0 0.0
    %616 = vmatprep.subr.mxu0 0.0
    %617 = vmatpush1.msra.mxu0 0.0
    %618 = vmatprep.subr.mxu0 0.0
    %619 = vmatpush1.msra.mxu0 0.0
    %620 = vmatprep.subr.mxu0 0.0
    %621 = vmatpush1.msra.mxu0 0.0
    %622 = vmatprep.subr.mxu0 0.0
    %623 = vmatpush1.msra.mxu0 0.0
    %624 = vmatprep.subr.mxu0 0.0
    %625 = vmatpush1.msra.mxu0 0.0
    %626 = vmatprep.subr.mxu0 0.0
    %627 = vmatpush1.msra.mxu0 0.0
    %628 = vmatprep.subr.mxu0 0.0
    %629 = vmatpush1.msra.mxu0 0.0
    %630 = vmatprep.subr.mxu0 0.0
    %631 = vmatpush1.msra.mxu0 0.0
    %632 = vmatprep.subr.mxu0 0.0
    %633 = vmatpush1.msra.mxu0 0.0
    %634 = vmatprep.subr.mxu0 0.0
    %635 = vmatpush1.msra.mxu0 0.0
    %636 = vmatprep.subr.mxu0 0.0
    %637 = vmatpush1.msra.mxu0 0.0
    %638 = vmatprep.subr.mxu0 0.0
    %639 = vmatpush1.msra.mxu0 0.0
    %640 = vmatprep.subr.mxu0 0.0
    %641 = vmatpush1.msra.mxu0 0.0
    %642 = vmatprep.subr.mxu0 0.0
    %643 = vmatpush1.msra.mxu0 0.0
    %644 = vmatprep.subr.mxu0 0.0
    %645 = vmatpush1.msra.mxu0 0.0
    %646 = vmatprep.subr.mxu0 0.0
    %647 = vmatpush1.msra.mxu0 0.0
    %648 = vmatprep.subr.mxu0 0.0
    %649 = vmatpush1.msra.mxu0 0.0
    %650 = vmatprep.subr.mxu0 0.0
    %651 = vmatpush1.msra.mxu0 0.0
    %652 = vmatprep.subr.mxu0 0.0
    %653 = vmatpush1.msra.mxu0 0.0
    %654 = vmatprep.mubr.f32.mxu0 0.0
    %655 = vmatmul.mubr.f32.gmra.mrb[0].mxu0 %v588
    %v656 = vpop.f32.mrb[0].mxu0
    %v657 = vadd.f32 0.0, %v656
    %v658 = vpop.f32.mrb[0].mxu0
    %659 = vdwg.mxu0
    %v660 = vadd.f32 %v503, %v657
    %v661 = vtanh.pop %v660
    %v662 = vld [vmem:[#allocation2 + $0x2] sm:$0x1]
    %v663 = vld [vmem:[#allocation2 + $0xa] sm:$0x1]
    %v665 = vsel %vm115, %v661, 0
    %667 = vmatprep.subr.mxu0 0.0
    %668 = vmatpush1.msra.mxu0 %v24
    %669 = vmatprep.subr.mxu0 0.0
    %670 = vmatpush1.msra.mxu0 %v25
    %671 = vmatprep.subr.mxu0 0.0
    %672 = vmatpush1.msra.mxu0 0.0
    %673 = vmatprep.subr.mxu0 0.0
    %674 = vmatpush1.msra.mxu0 0.0
    %675 = vmatprep.subr.mxu0 0.0
    %676 = vmatpush1.msra.mxu0 0.0
    %677 = vmatprep.subr.mxu0 0.0
    %678 = vmatpush1.msra.mxu0 0.0
    %679 = vmatprep.subr.mxu0 0.0
    %680 = vmatpush1.msra.mxu0 0.0
    %681 = vmatprep.subr.mxu0 0.0
    %682 = vmatpush1.msra.mxu0 0.0
    %683 = vmatprep.subr.mxu0 0.0
    %684 = vmatpush1.msra.mxu0 0.0
    %685 = vmatprep.subr.mxu0 0.0
    %686 = vmatpush1.msra.mxu0 0.0
    %687 = vmatprep.subr.mxu0 0.0
    %688 = vmatpush1.msra.mxu0 0.0
    %689 = vmatprep.subr.mxu0 0.0
    %690 = vmatpush1.msra.mxu0 0.0
    %691 = vmatprep.subr.mxu0 0.0
    %692 = vmatpush1.msra.mxu0 0.0
    %693 = vmatprep.subr.mxu0 0.0
    %694 = vmatpush1.msra.mxu0 0.0
    %695 = vmatprep.subr.mxu0 0.0
    %696 = vmatpush1.msra.mxu0 0.0
    %697 = vmatprep.subr.mxu0 0.0
    %698 = vmatpush1.msra.mxu0 0.0
    %699 = vmatprep.subr.mxu0 0.0
    %700 = vmatpush1.msra.mxu0 0.0
    %701 = vmatprep.subr.mxu0 0.0
    %702 = vmatpush1.msra.mxu0 0.0
    %703 = vmatprep.subr.mxu0 0.0
    %704 = vmatpush1.msra.mxu0 0.0
    %705 = vmatprep.subr.mxu0 0.0
    %706 = vmatpush1.msra.mxu0 0.0
    %707 = vmatprep.subr.mxu0 0.0
    %708 = vmatpush1.msra.mxu0 0.0
    %709 = vmatprep.subr.mxu0 0.0
    %710 = vmatpush1.msra.mxu0 0.0
    %711 = vmatprep.subr.mxu0 0.0
    %712 = vmatpush1.msra.mxu0 0.0
    %713 = vmatprep.subr.mxu0 0.0
    %714 = vmatpush1.msra.mxu0 0.0
    %715 = vmatprep.subr.mxu0 0.0
    %716 = vmatpush1.msra.mxu0 0.0
    %717 = vmatprep.subr.mxu0 0.0
    %718 = vmatpush1.msra.mxu0 0.0
    %719 = vmatprep.subr.mxu0 0.0
    %720 = vmatpush1.msra.mxu0 0.0
    %721 = vmatprep.subr.mxu0 0.0
    %722 = vmatpush1.msra.mxu0 0.0
    %723 = vmatprep.subr.mxu0 0.0
    %724 = vmatpush1.msra.mxu0 0.0
    %725 = vmatprep.subr.mxu0 0.0
    %726 = vmatpush1.msra.mxu0 0.0
    %727 = vmatprep.subr.mxu0 0.0
    %728 = vmatpush1.msra.mxu0 0.0
    %729 = vmatprep.subr.mxu0 0.0
    %730 = vmatpush1.msra.mxu0 0.0
    %731 = vmatprep.mubr.f32.mxu0 0.0
    %732 = vmatmul.mubr.f32.gmra.mrb[0].mxu0 %v665
    %v733 = vpop.f32.mrb[0].mxu0
    %v734 = vadd.f32 %v35, %v733
    %v735 = vpop.f32.mrb[0].mxu0
    %736 = vdwg.mxu0
    %737 = vmatprep.subr.mxu0 0.0
    %738 = vmatpush1.msra.mxu0 %v20
    %739 = vmatprep.subr.mxu0 0.0
    %740 = vmatpush1.msra.mxu0 %v21
    %741 = vmatprep.subr.mxu0 0.0
    %742 = vmatpush1.msra.mxu0 0.0
    %743 = vmatprep.subr.mxu0 0.0
    %744 = vmatpush1.msra.mxu0 0.0
    %745 = vmatprep.subr.mxu0 0.0
    %746 = vmatpush1.msra.mxu0 0.0
    %747 = vmatprep.subr.mxu0 0.0
    %748 = vmatpush1.msra.mxu0 0.0
    %749 = vmatprep.subr.mxu0 0.0
    %750 = vmatpush1.msra.mxu0 0.0
    %751 = vmatprep.subr.mxu0 0.0
    %752 = vmatpush1.msra.mxu0 0.0
    %753 = vmatprep.subr.mxu0 0.0
    %754 = vmatpush1.msra.mxu0 0.0
    %755 = vmatprep.subr.mxu0 0.0
    %756 = vmatpush1.msra.mxu0 0.0
    %757 = vmatprep.subr.mxu0 0.0
    %758 = vmatpush1.msra.mxu0 0.0
    %759 = vmatprep.subr.mxu0 0.0
    %760 = vmatpush1.msra.mxu0 0.0
    %761 = vmatprep.subr.mxu0 0.0
    %762 = vmatpush1.msra.mxu0 0.0
    %763 = vmatprep.subr.mxu0 0.0
    %764 = vmatpush1.msra.mxu0 0.0
    %765 = vmatprep.subr.mxu0 0.0
    %766 = vmatpush1.msra.mxu0 0.0
    %767 = vmatprep.subr.mxu0 0.0
    %768 = vmatpush1.msra.mxu0 0.0
    %769 = vmatprep.subr.mxu0 0.0
    %770 = vmatpush1.msra.mxu0 0.0
    %771 = vmatprep.subr.mxu0 0.0
    %772 = vmatpush1.msra.mxu0 0.0
    %773 = vmatprep.subr.mxu0 0.0
    %774 = vmatpush1.msra.mxu0 0.0
    %775 = vmatprep.subr.mxu0 0.0
    %776 = vmatpush1.msra.mxu0 0.0
    %777 = vmatprep.subr.mxu0 0.0
    %778 = vmatpush1.msra.mxu0 0.0
    %779 = vmatprep.subr.mxu0 0.0
    %780 = vmatpush1.msra.mxu0 0.0
    %781 = vmatprep.subr.mxu0 0.0
    %782 = vmatpush1.msra.mxu0 0.0
    %783 = vmatprep.subr.mxu0 0.0
    %784 = vmatpush1.msra.mxu0 0.0
    %785 = vmatprep.subr.mxu0 0.0
    %786 = vmatpush1.msra.mxu0 0.0
    %787 = vmatprep.subr.mxu0 0.0
    %788 = vmatpush1.msra.mxu0 0.0
    %789 = vmatprep.subr.mxu0 0.0
    %790 = vmatpush1.msra.mxu0 0.0
    %791 = vmatprep.subr.mxu0 0.0
    %792 = vmatpush1.msra.mxu0 0.0
    %793 = vmatprep.subr.mxu0 0.0
    %794 = vmatpush1.msra.mxu0 0.0
    %795 = vmatprep.subr.mxu0 0.0
    %796 = vmatpush1.msra.mxu0 0.0
    %797 = vmatprep.subr.mxu0 0.0
    %798 = vmatpush1.msra.mxu0 0.0
    %799 = vmatprep.subr.mxu0 0.0
    %800 = vmatpush1.msra.mxu0 0.0
    %801 = vmatprep.mubr.f32.mxu0 0.0
    %802 = vmatmul.mubr.f32.gmra.mrb[0].mxu0 %v588
    %v803 = vpop.f32.mrb[0].mxu0
    %v804 = vadd.f32 0.0, %v803
    %v805 = vpop.f32.mrb[0].mxu0
    %806 = vdwg.mxu0
    %v808 = vrot.slane %v804, 1
    %v811 = vadd.f32 %v662, %v804
    %v812 = vadd.f32 %v663, %v808
    %v813 = vtanh.pop %v811
    %v814 = vtanh.pop %v812
    %v817 = vrot.slane %v814, 7
    %v818 = vsel %vm355, %v817, %v813
    %v819 = vsel %vm115, %v818, 0
    %821 = vmatprep.subr.mxu0 0.0
    %822 = vmatpush1.msra.mxu0 %v22
    %823 = vmatprep.subr.mxu0 0.0
    %824 = vmatpush1.msra.mxu0 %v23
    %825 = vmatprep.subr.mxu0 0.0
    %826 = vmatpush1.msra.mxu0 0.0
    %827 = vmatprep.subr.mxu0 0.0
    %828 = vmatpush1.msra.mxu0 0.0
    %829 = vmatprep.subr.mxu0 0.0
    %830 = vmatpush1.msra.mxu0 0.0
    %831 = vmatprep.subr.mxu0 0.0
    %832 = vmatpush1.msra.mxu0 0.0
    %833 = vmatprep.subr.mxu0 0.0
    %834 = vmatpush1.msra.mxu0 0.0
    %835 = vmatprep.subr.mxu0 0.0
    %836 = vmatpush1.msra.mxu0 0.0
    %837 = vmatprep.subr.mxu0 0.0
    %838 = vmatpush1.msra.mxu0 0.0
    %839 = vmatprep.subr.mxu0 0.0
    %840 = vmatpush1.msra.mxu0 0.0
    %841 = vmatprep.subr.mxu0 0.0
    %842 = vmatpush1.msra.mxu0 0.0
    %843 = vmatprep.subr.mxu0 0.0
    %844 = vmatpush1.msra.mxu0 0.0
    %845 = vmatprep.subr.mxu0 0.0
    %846 = vmatpush1.msra.mxu0 0.0
    %847 = vmatprep.subr.mxu0 0.0
    %848 = vmatpush1.msra.mxu0 0.0
    %849 = vmatprep.subr.mxu0 0.0
    %850 = vmatpush1.msra.mxu0 0.0
    %851 = vmatprep.subr.mxu0 0.0
    %852 = vmatpush1.msra.mxu0 0.0
    %853 = vmatprep.subr.mxu0 0.0
    %854 = vmatpush1.msra.mxu0 0.0
    %855 = vmatprep.subr.mxu0 0.0
    %856 = vmatpush1.msra.mxu0 0.0
    %857 = vmatprep.subr.mxu0 0.0
    %858 = vmatpush1.msra.mxu0 0.0
    %859 = vmatprep.subr.mxu0 0.0
    %860 = vmatpush1.msra.mxu0 0.0
    %861 = vmatprep.subr.mxu0 0.0
    %862 = vmatpush1.msra.mxu0 0.0
    %863 = vmatprep.subr.mxu0 0.0
    %864 = vmatpush1.msra.mxu0 0.0
    %865 = vmatprep.subr.mxu0 0.0
    %866 = vmatpush1.msra.mxu0 0.0
    %867 = vmatprep.subr.mxu0 0.0
    %868 = vmatpush1.msra.mxu0 0.0
    %869 = vmatprep.subr.mxu0 0.0
    %870 = vmatpush1.msra.mxu0 0.0
    %871 = vmatprep.subr.mxu0 0.0
    %872 = vmatpush1.msra.mxu0 0.0
    %873 = vmatprep.subr.mxu0 0.0
    %874 = vmatpush1.msra.mxu0 0.0
    %875 = vmatprep.subr.mxu0 0.0
    %876 = vmatpush1.msra.mxu0 0.0
    %877 = vmatprep.subr.mxu0 0.0
    %878 = vmatpush1.msra.mxu0 0.0
    %879 = vmatprep.subr.mxu0 0.0
    %880 = vmatpush1.msra.mxu0 0.0
    %881 = vmatprep.subr.mxu0 0.0
    %882 = vmatpush1.msra.mxu0 0.0
    %883 = vmatprep.subr.mxu0 0.0
    %884 = vmatpush1.msra.mxu0 0.0
    %885 = vmatprep.mubr.f32.mxu0 0.0
    %886 = vmatmul.mubr.f32.gmra.mrb[0].mxu0 %v819
    %v887 = vpop.f32.mrb[0].mxu0
    %v888 = vadd.f32 0.0, %v887
    %v889 = vpop.f32.mrb[0].mxu0
    %890 = vdwg.mxu0
    %v891 = vadd.f32 %v734, %v888
    %v892 = vtanh.pop %v891
    %v893 = vld [vmem:[#allocation2 + $0x3] sm:$0x1]
    %v894 = vld [vmem:[#allocation2 + $0xb] sm:$0x1]
    %v896 = vsel %vm115, %v892, 0
    %898 = vmatprep.subr.mxu0 0.0
    %899 = vmatpush1.msra.mxu0 %v24
    %900 = vmatprep.subr.mxu0 0.0
    %901 = vmatpush1.msra.mxu0 %v25
    %902 = vmatprep.subr.mxu0 0.0
    %903 = vmatpush1.msra.mxu0 0.0
    %904 = vmatprep.subr.mxu0 0.0
    %905 = vmatpush1.msra.mxu0 0.0
    %906 = vmatprep.subr.mxu0 0.0
    %907 = vmatpush1.msra.mxu0 0.0
    %908 = vmatprep.subr.mxu0 0.0
    %909 = vmatpush1.msra.mxu0 0.0
    %910 = vmatprep.subr.mxu0 0.0
    %911 = vmatpush1.msra.mxu0 0.0
    %912 = vmatprep.subr.mxu0 0.0
    %913 = vmatpush1.msra.mxu0 0.0
    %914 = vmatprep.subr.mxu0 0.0
    %915 = vmatpush1.msra.mxu0 0.0
    %916 = vmatprep.subr.mxu0 0.0
    %917 = vmatpush1.msra.mxu0 0.0
    %918 = vmatprep.subr.mxu0 0.0
    %919 = vmatpush1.msra.mxu0 0.0
    %920 = vmatprep.subr.mxu0 0.0
    %921 = vmatpush1.msra.mxu0 0.0
    %922 = vmatprep.subr.mxu0 0.0
    %923 = vmatpush1.msra.mxu0 0.0
    %924 = vmatprep.subr.mxu0 0.0
    %925 = vmatpush1.msra.mxu0 0.0
    %926 = vmatprep.subr.mxu0 0.0
    %927 = vmatpush1.msra.mxu0 0.0
    %928 = vmatprep.subr.mxu0 0.0
    %929 = vmatpush1.msra.mxu0 0.0
    %930 = vmatprep.subr.mxu0 0.0
    %931 = vmatpush1.msra.mxu0 0.0
    %932 = vmatprep.subr.mxu0 0.0
    %933 = vmatpush1.msra.mxu0 0.0
    %934 = vmatprep.subr.mxu0 0.0
    %935 = vmatpush1.msra.mxu0 0.0
    %936 = vmatprep.subr.mxu0 0.0
    %937 = vmatpush1.msra.mxu0 0.0
    %938 = vmatprep.subr.mxu0 0.0
    %939 = vmatpush1.msra.mxu0 0.0
    %940 = vmatprep.subr.mxu0 0.0
    %941 = vmatpush1.msra.mxu0 0.0
    %942 = vmatprep.subr.mxu0 0.0
    %943 = vmatpush1.msra.mxu0 0.0
    %944 = vmatprep.subr.mxu0 0.0
    %945 = vmatpush1.msra.mxu0 0.0
    %946 = vmatprep.subr.mxu0 0.0
    %947 = vmatpush1.msra.mxu0 0.0
    %948 = vmatprep.subr.mxu0 0.0
    %949 = vmatpush1.msra.mxu0 0.0
    %950 = vmatprep.subr.mxu0 0.0
    %951 = vmatpush1.msra.mxu0 0.0
    %952 = vmatprep.subr.mxu0 0.0
    %953 = vmatpush1.msra.mxu0 0.0
    %954 = vmatprep.subr.mxu0 0.0
    %955 = vmatpush1.msra.mxu0 0.0
    %956 = vmatprep.subr.mxu0 0.0
    %957 = vmatpush1.msra.mxu0 0.0
    %958 = vmatprep.subr.mxu0 0.0
    %959 = vmatpush1.msra.mxu0 0.0
    %960 = vmatprep.subr.mxu0 0.0
    %961 = vmatpush1.msra.mxu0 0.0
    %962 = vmatprep.mubr.f32.mxu0 0.0
    %963 = vmatmul.mubr.f32.gmra.mrb[0].mxu0 %v896
    %v964 = vpop.f32.mrb[0].mxu0
    %v965 = vadd.f32 %v35, %v964
    %v966 = vpop.f32.mrb[0].mxu0
    %967 = vdwg.mxu0
    %968 = vmatprep.subr.mxu0 0.0
    %969 = vmatpush1.msra.mxu0 %v20
    %970 = vmatprep.subr.mxu0 0.0
    %971 = vmatpush1.msra.mxu0 %v21
    %972 = vmatprep.subr.mxu0 0.0
    %973 = vmatpush1.msra.mxu0 0.0
    %974 = vmatprep.subr.mxu0 0.0
    %975 = vmatpush1.msra.mxu0 0.0
    %976 = vmatprep.subr.mxu0 0.0
    %977 = vmatpush1.msra.mxu0 0.0
    %978 = vmatprep.subr.mxu0 0.0
    %979 = vmatpush1.msra.mxu0 0.0
    %980 = vmatprep.subr.mxu0 0.0
    %981 = vmatpush1.msra.mxu0 0.0
    %982 = vmatprep.subr.mxu0 0.0
    %983 = vmatpush1.msra.mxu0 0.0
    %984 = vmatprep.subr.mxu0 0.0
    %985 = vmatpush1.msra.mxu0 0.0
    %986 = vmatprep.subr.mxu0 0.0
    %987 = vmatpush1.msra.mxu0 0.0
    %988 = vmatprep.subr.mxu0 0.0
    %989 = vmatpush1.msra.mxu0 0.0
    %990 = vmatprep.subr.mxu0 0.0
    %991 = vmatpush1.msra.mxu0 0.0
    %992 = vmatprep.subr.mxu0 0.0
    %993 = vmatpush1.msra.mxu0 0.0
    %994 = vmatprep.subr.mxu0 0.0
    %995 = vmatpush1.msra.mxu0 0.0
    %996 = vmatprep.subr.mxu0 0.0
    %997 = vmatpush1.msra.mxu0 0.0
    %998 = vmatprep.subr.mxu0 0.0
    %999 = vmatpush1.msra.mxu0 0.0
    %1000 = vmatprep.subr.mxu0 0.0
    %1001 = vmatpush1.msra.mxu0 0.0
    %1002 = vmatprep.subr.mxu0 0.0
    %1003 = vmatpush1.msra.mxu0 0.0
    %1004 = vmatprep.subr.mxu0 0.0
    %1005 = vmatpush1.msra.mxu0 0.0
    %1006 = vmatprep.subr.mxu0 0.0
    %1007 = vmatpush1.msra.mxu0 0.0
    %1008 = vmatprep.subr.mxu0 0.0
    %1009 = vmatpush1.msra.mxu0 0.0
    %1010 = vmatprep.subr.mxu0 0.0
    %1011 = vmatpush1.msra.mxu0 0.0
    %1012 = vmatprep.subr.mxu0 0.0
    %1013 = vmatpush1.msra.mxu0 0.0
    %1014 = vmatprep.subr.mxu0 0.0
    %1015 = vmatpush1.msra.mxu0 0.0
    %1016 = vmatprep.subr.mxu0 0.0
    %1017 = vmatpush1.msra.mxu0 0.0
    %1018 = vmatprep.subr.mxu0 0.0
    %1019 = vmatpush1.msra.mxu0 0.0
    %1020 = vmatprep.subr.mxu0 0.0
    %1021 = vmatpush1.msra.mxu0 0.0
    %1022 = vmatprep.subr.mxu0 0.0
    %1023 = vmatpush1.msra.mxu0 0.0
    %1024 = vmatprep.subr.mxu0 0.0
    %1025 = vmatpush1.msra.mxu0 0.0
    %1026 = vmatprep.subr.mxu0 0.0
    %1027 = vmatpush1.msra.mxu0 0.0
    %1028 = vmatprep.subr.mxu0 0.0
    %1029 = vmatpush1.msra.mxu0 0.0
    %1030 = vmatprep.subr.mxu0 0.0
    %1031 = vmatpush1.msra.mxu0 0.0
    %1032 = vmatprep.mubr.f32.mxu0 0.0
    %1033 = vmatmul.mubr.f32.gmra.mrb[0].mxu0 %v819
    %v1034 = vpop.f32.mrb[0].mxu0
    %v1035 = vadd.f32 0.0, %v1034
    %v1036 = vpop.f32.mrb[0].mxu0
    %1037 = vdwg.mxu0
    %v1039 = vrot.slane %v1035, 1
    %v1042 = vadd.f32 %v893, %v1035
    %v1043 = vadd.f32 %v894, %v1039
    %v1044 = vtanh.pop %v1042
    %v1045 = vtanh.pop %v1043
    %v1048 = vrot.slane %v1045, 7
    %v1049 = vsel %vm355, %v1048, %v1044
    %v1050 = vsel %vm115, %v1049, 0
    %1052 = vmatprep.subr.mxu0 0.0
    %1053 = vmatpush1.msra.mxu0 %v22
    %1054 = vmatprep.subr.mxu0 0.0
    %1055 = vmatpush1.msra.mxu0 %v23
    %1056 = vmatprep.subr.mxu0 0.0
    %1057 = vmatpush1.msra.mxu0 0.0
    %1058 = vmatprep.subr.mxu0 0.0
    %1059 = vmatpush1.msra.mxu0 0.0
    %1060 = vmatprep.subr.mxu0 0.0
    %1061 = vmatpush1.msra.mxu0 0.0
    %1062 = vmatprep.subr.mxu0 0.0
    %1063 = vmatpush1.msra.mxu0 0.0
    %1064 = vmatprep.subr.mxu0 0.0
    %1065 = vmatpush1.msra.mxu0 0.0
    %1066 = vmatprep.subr.mxu0 0.0
    %1067 = vmatpush1.msra.mxu0 0.0
    %1068 = vmatprep.subr.mxu0 0.0
    %1069 = vmatpush1.msra.mxu0 0.0
    %1070 = vmatprep.subr.mxu0 0.0
    %1071 = vmatpush1.msra.mxu0 0.0
    %1072 = vmatprep.subr.mxu0 0.0
    %1073 = vmatpush1.msra.mxu0 0.0
    %1074 = vmatprep.subr.mxu0 0.0
    %1075 = vmatpush1.msra.mxu0 0.0
    %1076 = vmatprep.subr.mxu0 0.0
    %1077 = vmatpush1.msra.mxu0 0.0
    %1078 = vmatprep.subr.mxu0 0.0
    %1079 = vmatpush1.msra.mxu0 0.0
    %1080 = vmatprep.subr.mxu0 0.0
    %1081 = vmatpush1.msra.mxu0 0.0
    %1082 = vmatprep.subr.mxu0 0.0
    %1083 = vmatpush1.msra.mxu0 0.0
    %1084 = vmatprep.subr.mxu0 0.0
    %1085 = vmatpush1.msra.mxu0 0.0
    %1086 = vmatprep.subr.mxu0 0.0
    %1087 = vmatpush1.msra.mxu0 0.0
    %1088 = vmatprep.subr.mxu0 0.0
    %1089 = vmatpush1.msra.mxu0 0.0
    %1090 = vmatprep.subr.mxu0 0.0
    %1091 = vmatpush1.msra.mxu0 0.0
    %1092 = vmatprep.subr.mxu0 0.0
    %1093 = vmatpush1.msra.mxu0 0.0
    %1094 = vmatprep.subr.mxu0 0.0
    %1095 = vmatpush1.msra.mxu0 0.0
    %1096 = vmatprep.subr.mxu0 0.0
    %1097 = vmatpush1.msra.mxu0 0.0
    %1098 = vmatprep.subr.mxu0 0.0
    %1099 = vmatpush1.msra.mxu0 0.0
    %1100 = vmatprep.subr.mxu0 0.0
    %1101 = vmatpush1.msra.mxu0 0.0
    %1102 = vmatprep.subr.mxu0 0.0
    %1103 = vmatpush1.msra.mxu0 0.0
    %1104 = vmatprep.subr.mxu0 0.0
    %1105 = vmatpush1.msra.mxu0 0.0
    %1106 = vmatprep.subr.mxu0 0.0
    %1107 = vmatpush1.msra.mxu0 0.0
    %1108 = vmatprep.subr.mxu0 0.0
    %1109 = vmatpush1.msra.mxu0 0.0
    %1110 = vmatprep.subr.mxu0 0.0
    %1111 = vmatpush1.msra.mxu0 0.0
    %1112 = vmatprep.subr.mxu0 0.0
    %1113 = vmatpush1.msra.mxu0 0.0
    %1114 = vmatprep.subr.mxu0 0.0
    %1115 = vmatpush1.msra.mxu0 0.0
    %1116 = vmatprep.mubr.f32.mxu0 0.0
    %1117 = vmatmul.mubr.f32.gmra.mrb[0].mxu0 %v1050
    %v1118 = vpop.f32.mrb[0].mxu0
    %v1119 = vadd.f32 0.0, %v1118
    %v1120 = vpop.f32.mrb[0].mxu0
    %1121 = vdwg.mxu0
    %v1122 = vadd.f32 %v965, %v1119
    %v1123 = vtanh.pop %v1122
    %v1124 = vld [vmem:[#allocation2 + $0x4] sm:$0x1]
    %v1125 = vld [vmem:[#allocation2 + $0xc] sm:$0x1]
    %v1127 = vsel %vm115, %v1123, 0
    %1129 = vmatprep.subr.mxu0 0.0
    %1130 = vmatpush1.msra.mxu0 %v24
    %1131 = vmatprep.subr.mxu0 0.0
    %1132 = vmatpush1.msra.mxu0 %v25
    %1133 = vmatprep.subr.mxu0 0.0
    %1134 = vmatpush1.msra.mxu0 0.0
    %1135 = vmatprep.subr.mxu0 0.0
    %1136 = vmatpush1.msra.mxu0 0.0
    %1137 = vmatprep.subr.mxu0 0.0
    %1138 = vmatpush1.msra.mxu0 0.0
    %1139 = vmatprep.subr.mxu0 0.0
    %1140 = vmatpush1.msra.mxu0 0.0
    %1141 = vmatprep.subr.mxu0 0.0
    %1142 = vmatpush1.msra.mxu0 0.0
    %1143 = vmatprep.subr.mxu0 0.0
    %1144 = vmatpush1.msra.mxu0 0.0
    %1145 = vmatprep.subr.mxu0 0.0
    %1146 = vmatpush1.msra.mxu0 0.0
    %1147 = vmatprep.subr.mxu0 0.0
    %1148 = vmatpush1.msra.mxu0 0.0
    %1149 = vmatprep.subr.mxu0 0.0
    %1150 = vmatpush1.msra.mxu0 0.0
    %1151 = vmatprep.subr.mxu0 0.0
    %1152 = vmatpush1.msra.mxu0 0.0
    %1153 = vmatprep.subr.mxu0 0.0
    %1154 = vmatpush1.msra.mxu0 0.0
    %1155 = vmatprep.subr.mxu0 0.0
    %1156 = vmatpush1.msra.mxu0 0.0
    %1157 = vmatprep.subr.mxu0 0.0
    %1158 = vmatpush1.msra.mxu0 0.0
    %1159 = vmatprep.subr.mxu0 0.0
    %1160 = vmatpush1.msra.mxu0 0.0
    %1161 = vmatprep.subr.mxu0 0.0
    %1162 = vmatpush1.msra.mxu0 0.0
    %1163 = vmatprep.subr.mxu0 0.0
    %1164 = vmatpush1.msra.mxu0 0.0
    %1165 = vmatprep.subr.mxu0 0.0
    %1166 = vmatpush1.msra.mxu0 0.0
    %1167 = vmatprep.subr.mxu0 0.0
    %1168 = vmatpush1.msra.mxu0 0.0
    %1169 = vmatprep.subr.mxu0 0.0
    %1170 = vmatpush1.msra.mxu0 0.0
    %1171 = vmatprep.subr.mxu0 0.0
    %1172 = vmatpush1.msra.mxu0 0.0
    %1173 = vmatprep.subr.mxu0 0.0
    %1174 = vmatpush1.msra.mxu0 0.0
    %1175 = vmatprep.subr.mxu0 0.0
    %1176 = vmatpush1.msra.mxu0 0.0
    %1177 = vmatprep.subr.mxu0 0.0
    %1178 = vmatpush1.msra.mxu0 0.0
    %1179 = vmatprep.subr.mxu0 0.0
    %1180 = vmatpush1.msra.mxu0 0.0
    %1181 = vmatprep.subr.mxu0 0.0
    %1182 = vmatpush1.msra.mxu0 0.0
    %1183 = vmatprep.subr.mxu0 0.0
    %1184 = vmatpush1.msra.mxu0 0.0
    %1185 = vmatprep.subr.mxu0 0.0
    %1186 = vmatpush1.msra.mxu0 0.0
    %1187 = vmatprep.subr.mxu0 0.0
    %1188 = vmatpush1.msra.mxu0 0.0
    %1189 = vmatprep.subr.mxu0 0.0
    %1190 = vmatpush1.msra.mxu0 0.0
    %1191 = vmatprep.subr.mxu0 0.0
    %1192 = vmatpush1.msra.mxu0 0.0
    %1193 = vmatprep.mubr.f32.mxu0 0.0
    %1194 = vmatmul.mubr.f32.gmra.mrb[0].mxu0 %v1127
    %v1195 = vpop.f32.mrb[0].mxu0
    %v1196 = vadd.f32 %v35, %v1195
    %v1197 = vpop.f32.mrb[0].mxu0
    %1198 = vdwg.mxu0
    %1199 = vmatprep.subr.mxu0 0.0
    %1200 = vmatpush1.msra.mxu0 %v20
    %1201 = vmatprep.subr.mxu0 0.0
    %1202 = vmatpush1.msra.mxu0 %v21
    %1203 = vmatprep.subr.mxu0 0.0
    %1204 = vmatpush1.msra.mxu0 0.0
    %1205 = vmatprep.subr.mxu0 0.0
    %1206 = vmatpush1.msra.mxu0 0.0
    %1207 = vmatprep.subr.mxu0 0.0
    %1208 = vmatpush1.msra.mxu0 0.0
    %1209 = vmatprep.subr.mxu0 0.0
    %1210 = vmatpush1.msra.mxu0 0.0
    %1211 = vmatprep.subr.mxu0 0.0
    %1212 = vmatpush1.msra.mxu0 0.0
    %1213 = vmatprep.subr.mxu0 0.0
    %1214 = vmatpush1.msra.mxu0 0.0
    %1215 = vmatprep.subr.mxu0 0.0
    %1216 = vmatpush1.msra.mxu0 0.0
    %1217 = vmatprep.subr.mxu0 0.0
    %1218 = vmatpush1.msra.mxu0 0.0
    %1219 = vmatprep.subr.mxu0 0.0
    %1220 = vmatpush1.msra.mxu0 0.0
    %1221 = vmatprep.subr.mxu0 0.0
    %1222 = vmatpush1.msra.mxu0 0.0
    %1223 = vmatprep.subr.mxu0 0.0
    %1224 = vmatpush1.msra.mxu0 0.0
    %1225 = vmatprep.subr.mxu0 0.0
    %1226 = vmatpush1.msra.mxu0 0.0
    %1227 = vmatprep.subr.mxu0 0.0
    %1228 = vmatpush1.msra.mxu0 0.0
    %1229 = vmatprep.subr.mxu0 0.0
    %1230 = vmatpush1.msra.mxu0 0.0
    %1231 = vmatprep.subr.mxu0 0.0
    %1232 = vmatpush1.msra.mxu0 0.0
    %1233 = vmatprep.subr.mxu0 0.0
    %1234 = vmatpush1.msra.mxu0 0.0
    %1235 = vmatprep.subr.mxu0 0.0
    %1236 = vmatpush1.msra.mxu0 0.0
    %1237 = vmatprep.subr.mxu0 0.0
    %1238 = vmatpush1.msra.mxu0 0.0
    %1239 = vmatprep.subr.mxu0 0.0
    %1240 = vmatpush1.msra.mxu0 0.0
    %1241 = vmatprep.subr.mxu0 0.0
    %1242 = vmatpush1.msra.mxu0 0.0
    %1243 = vmatprep.subr.mxu0 0.0
    %1244 = vmatpush1.msra.mxu0 0.0
    %1245 = vmatprep.subr.mxu0 0.0
    %1246 = vmatpush1.msra.mxu0 0.0
    %1247 = vmatprep.subr.mxu0 0.0
    %1248 = vmatpush1.msra.mxu0 0.0
    %1249 = vmatprep.subr.mxu0 0.0
    %1250 = vmatpush1.msra.mxu0 0.0
    %1251 = vmatprep.subr.mxu0 0.0
    %1252 = vmatpush1.msra.mxu0 0.0
    %1253 = vmatprep.subr.mxu0 0.0
    %1254 = vmatpush1.msra.mxu0 0.0
    %1255 = vmatprep.subr.mxu0 0.0
    %1256 = vmatpush1.msra.mxu0 0.0
    %1257 = vmatprep.subr.mxu0 0.0
    %1258 = vmatpush1.msra.mxu0 0.0
    %1259 = vmatprep.subr.mxu0 0.0
    %1260 = vmatpush1.msra.mxu0 0.0
    %1261 = vmatprep.subr.mxu0 0.0
    %1262 = vmatpush1.msra.mxu0 0.0
    %1263 = vmatprep.mubr.f32.mxu0 0.0
    %1264 = vmatmul.mubr.f32.gmra.mrb[0].mxu0 %v1050
    %v1265 = vpop.f32.mrb[0].mxu0
    %v1266 = vadd.f32 0.0, %v1265
    %v1267 = vpop.f32.mrb[0].mxu0
    %1268 = vdwg.mxu0
    %v1270 = vrot.slane %v1266, 1
    %v1273 = vadd.f32 %v1124, %v1266
    %v1274 = vadd.f32 %v1125, %v1270
    %v1275 = vtanh.pop %v1273
    %v1276 = vtanh.pop %v1274
    %v1279 = vrot.slane %v1276, 7
    %v1280 = vsel %vm355, %v1279, %v1275
    %v1281 = vsel %vm115, %v1280, 0
    %1283 = vmatprep.subr.mxu0 0.0
    %1284 = vmatpush1.msra.mxu0 %v22
    %1285 = vmatprep.subr.mxu0 0.0
    %1286 = vmatpush1.msra.mxu0 %v23
    %1287 = vmatprep.subr.mxu0 0.0
    %1288 = vmatpush1.msra.mxu0 0.0
    %1289 = vmatprep.subr.mxu0 0.0
    %1290 = vmatpush1.msra.mxu0 0.0
    %1291 = vmatprep.subr.mxu0 0.0
    %1292 = vmatpush1.msra.mxu0 0.0
    %1293 = vmatprep.subr.mxu0 0.0
    %1294 = vmatpush1.msra.mxu0 0.0
    %1295 = vmatprep.subr.mxu0 0.0
    %1296 = vmatpush1.msra.mxu0 0.0
    %1297 = vmatprep.subr.mxu0 0.0
    %1298 = vmatpush1.msra.mxu0 0.0
    %1299 = vmatprep.subr.mxu0 0.0
    %1300 = vmatpush1.msra.mxu0 0.0
    %1301 = vmatprep.subr.mxu0 0.0
    %1302 = vmatpush1.msra.mxu0 0.0
    %1303 = vmatprep.subr.mxu0 0.0
    %1304 = vmatpush1.msra.mxu0 0.0
    %1305 = vmatprep.subr.mxu0 0.0
    %1306 = vmatpush1.msra.mxu0 0.0
    %1307 = vmatprep.subr.mxu0 0.0
    %1308 = vmatpush1.msra.mxu0 0.0
    %1309 = vmatprep.subr.mxu0 0.0
    %1310 = vmatpush1.msra.mxu0 0.0
    %1311 = vmatprep.subr.mxu0 0.0
    %1312 = vmatpush1.msra.mxu0 0.0
    %1313 = vmatprep.subr.mxu0 0.0
    %1314 = vmatpush1.msra.mxu0 0.0
    %1315 = vmatprep.subr.mxu0 0.0
    %1316 = vmatpush1.msra.mxu0 0.0
    %1317 = vmatprep.subr.mxu0 0.0
    %1318 = vmatpush1.msra.mxu0 0.0
    %1319 = vmatprep.subr.mxu0 0.0
    %1320 = vmatpush1.msra.mxu0 0.0
    %1321 = vmatprep.subr.mxu0 0.0
    %1322 = vmatpush1.msra.mxu0 0.0
    %1323 = vmatprep.subr.mxu0 0.0
    %1324 = vmatpush1.msra.mxu0 0.0
    %1325 = vmatprep.subr.mxu0 0.0
    %1326 = vmatpush1.msra.mxu0 0.0
    %1327 = vmatprep.subr.mxu0 0.0
    %1328 = vmatpush1.msra.mxu0 0.0
    %1329 = vmatprep.subr.mxu0 0.0
    %1330 = vmatpush1.msra.mxu0 0.0
    %1331 = vmatprep.subr.mxu0 0.0
    %1332 = vmatpush1.msra.mxu0 0.0
    %1333 = vmatprep.subr.mxu0 0.0
    %1334 = vmatpush1.msra.mxu0 0.0
    %1335 = vmatprep.subr.mxu0 0.0
    %1336 = vmatpush1.msra.mxu0 0.0
    %1337 = vmatprep.subr.mxu0 0.0
    %1338 = vmatpush1.msra.mxu0 0.0
    %1339 = vmatprep.subr.mxu0 0.0
    %1340 = vmatpush1.msra.mxu0 0.0
    %1341 = vmatprep.subr.mxu0 0.0
    %1342 = vmatpush1.msra.mxu0 0.0
    %1343 = vmatprep.subr.mxu0 0.0
    %1344 = vmatpush1.msra.mxu0 0.0
    %1345 = vmatprep.subr.mxu0 0.0
    %1346 = vmatpush1.msra.mxu0 0.0
    %1347 = vmatprep.mubr.f32.mxu0 0.0
    %1348 = vmatmul.mubr.f32.gmra.mrb[0].mxu0 %v1281
    %v1349 = vpop.f32.mrb[0].mxu0
    %v1350 = vadd.f32 0.0, %v1349
    %v1351 = vpop.f32.mrb[0].mxu0
    %1352 = vdwg.mxu0
    %v1353 = vadd.f32 %v1196, %v1350
    %v1354 = vtanh.pop %v1353
    %v1355 = vld [vmem:[#allocation2 + $0x5] sm:$0x1]
    %v1356 = vld [vmem:[#allocation2 + $0xd] sm:$0x1]
    %v1358 = vsel %vm115, %v1354, 0
    %1360 = vmatprep.subr.mxu0 0.0
    %1361 = vmatpush1.msra.mxu0 %v24
    %1362 = vmatprep.subr.mxu0 0.0
    %1363 = vmatpush1.msra.mxu0 %v25
    %1364 = vmatprep.subr.mxu0 0.0
    %1365 = vmatpush1.msra.mxu0 0.0
    %1366 = vmatprep.subr.mxu0 0.0
    %1367 = vmatpush1.msra.mxu0 0.0
    %1368 = vmatprep.subr.mxu0 0.0
    %1369 = vmatpush1.msra.mxu0 0.0
    %1370 = vmatprep.subr.mxu0 0.0
    %1371 = vmatpush1.msra.mxu0 0.0
    %1372 = vmatprep.subr.mxu0 0.0
    %1373 = vmatpush1.msra.mxu0 0.0
    %1374 = vmatprep.subr.mxu0 0.0
    %1375 = vmatpush1.msra.mxu0 0.0
    %1376 = vmatprep.subr.mxu0 0.0
    %1377 = vmatpush1.msra.mxu0 0.0
    %1378 = vmatprep.subr.mxu0 0.0
    %1379 = vmatpush1.msra.mxu0 0.0
    %1380 = vmatprep.subr.mxu0 0.0
    %1381 = vmatpush1.msra.mxu0 0.0
    %1382 = vmatprep.subr.mxu0 0.0
    %1383 = vmatpush1.msra.mxu0 0.0
    %1384 = vmatprep.subr.mxu0 0.0
    %1385 = vmatpush1.msra.mxu0 0.0
    %1386 = vmatprep.subr.mxu0 0.0
    %1387 = vmatpush1.msra.mxu0 0.0
    %1388 = vmatprep.subr.mxu0 0.0
    %1389 = vmatpush1.msra.mxu0 0.0
    %1390 = vmatprep.subr.mxu0 0.0
    %1391 = vmatpush1.msra.mxu0 0.0
    %1392 = vmatprep.subr.mxu0 0.0
    %1393 = vmatpush1.msra.mxu0 0.0
    %1394 = vmatprep.subr.mxu0 0.0
    %1395 = vmatpush1.msra.mxu0 0.0
    %1396 = vmatprep.subr.mxu0 0.0
    %1397 = vmatpush1.msra.mxu0 0.0
    %1398 = vmatprep.subr.mxu0 0.0
    %1399 = vmatpush1.msra.mxu0 0.0
    %1400 = vmatprep.subr.mxu0 0.0
    %1401 = vmatpush1.msra.mxu0 0.0
    %1402 = vmatprep.subr.mxu0 0.0
    %1403 = vmatpush1.msra.mxu0 0.0
    %1404 = vmatprep.subr.mxu0 0.0
    %1405 = vmatpush1.msra.mxu0 0.0
    %1406 = vmatprep.subr.mxu0 0.0
    %1407 = vmatpush1.msra.mxu0 0.0
    %1408 = vmatprep.subr.mxu0 0.0
    %1409 = vmatpush1.msra.mxu0 0.0
    %1410 = vmatprep.subr.mxu0 0.0
    %1411 = vmatpush1.msra.mxu0 0.0
    %1412 = vmatprep.subr.mxu0 0.0
    %1413 = vmatpush1.msra.mxu0 0.0
    %1414 = vmatprep.subr.mxu0 0.0
    %1415 = vmatpush1.msra.mxu0 0.0
    %1416 = vmatprep.subr.mxu0 0.0
    %1417 = vmatpush1.msra.mxu0 0.0
    %1418 = vmatprep.subr.mxu0 0.0
    %1419 = vmatpush1.msra.mxu0 0.0
    %1420 = vmatprep.subr.mxu0 0.0
    %1421 = vmatpush1.msra.mxu0 0.0
    %1422 = vmatprep.subr.mxu0 0.0
    %1423 = vmatpush1.msra.mxu0 0.0
    %1424 = vmatprep.mubr.f32.mxu0 0.0
    %1425 = vmatmul.mubr.f32.gmra.mrb[0].mxu0 %v1358
    %v1426 = vpop.f32.mrb[0].mxu0
    %v1427 = vadd.f32 %v35, %v1426
    %v1428 = vpop.f32.mrb[0].mxu0
    %1429 = vdwg.mxu0
    %1430 = vmatprep.subr.mxu0 0.0
    %1431 = vmatpush1.msra.mxu0 %v20
    %1432 = vmatprep.subr.mxu0 0.0
    %1433 = vmatpush1.msra.mxu0 %v21
    %1434 = vmatprep.subr.mxu0 0.0
    %1435 = vmatpush1.msra.mxu0 0.0
    %1436 = vmatprep.subr.mxu0 0.0
    %1437 = vmatpush1.msra.mxu0 0.0
    %1438 = vmatprep.subr.mxu0 0.0
    %1439 = vmatpush1.msra.mxu0 0.0
    %1440 = vmatprep.subr.mxu0 0.0
    %1441 = vmatpush1.msra.mxu0 0.0
    %1442 = vmatprep.subr.mxu0 0.0
    %1443 = vmatpush1.msra.mxu0 0.0
    %1444 = vmatprep.subr.mxu0 0.0
    %1445 = vmatpush1.msra.mxu0 0.0
    %1446 = vmatprep.subr.mxu0 0.0
    %1447 = vmatpush1.msra.mxu0 0.0
    %1448 = vmatprep.subr.mxu0 0.0
    %1449 = vmatpush1.msra.mxu0 0.0
    %1450 = vmatprep.subr.mxu0 0.0
    %1451 = vmatpush1.msra.mxu0 0.0
    %1452 = vmatprep.subr.mxu0 0.0
    %1453 = vmatpush1.msra.mxu0 0.0
    %1454 = vmatprep.subr.mxu0 0.0
    %1455 = vmatpush1.msra.mxu0 0.0
    %1456 = vmatprep.subr.mxu0 0.0
    %1457 = vmatpush1.msra.mxu0 0.0
    %1458 = vmatprep.subr.mxu0 0.0
    %1459 = vmatpush1.msra.mxu0 0.0
    %1460 = vmatprep.subr.mxu0 0.0
    %1461 = vmatpush1.msra.mxu0 0.0
    %1462 = vmatprep.subr.mxu0 0.0
    %1463 = vmatpush1.msra.mxu0 0.0
    %1464 = vmatprep.subr.mxu0 0.0
    %1465 = vmatpush1.msra.mxu0 0.0
    %1466 = vmatprep.subr.mxu0 0.0
    %1467 = vmatpush1.msra.mxu0 0.0
    %1468 = vmatprep.subr.mxu0 0.0
    %1469 = vmatpush1.msra.mxu0 0.0
    %1470 = vmatprep.subr.mxu0 0.0
    %1471 = vmatpush1.msra.mxu0 0.0
    %1472 = vmatprep.subr.mxu0 0.0
    %1473 = vmatpush1.msra.mxu0 0.0
    %1474 = vmatprep.subr.mxu0 0.0
    %1475 = vmatpush1.msra.mxu0 0.0
    %1476 = vmatprep.subr.mxu0 0.0
    %1477 = vmatpush1.msra.mxu0 0.0
    %1478 = vmatprep.subr.mxu0 0.0
    %1479 = vmatpush1.msra.mxu0 0.0
    %1480 = vmatprep.subr.mxu0 0.0
    %1481 = vmatpush1.msra.mxu0 0.0
    %1482 = vmatprep.subr.mxu0 0.0
    %1483 = vmatpush1.msra.mxu0 0.0
    %1484 = vmatprep.subr.mxu0 0.0
    %1485 = vmatpush1.msra.mxu0 0.0
    %1486 = vmatprep.subr.mxu0 0.0
    %1487 = vmatpush1.msra.mxu0 0.0
    %1488 = vmatprep.subr.mxu0 0.0
    %1489 = vmatpush1.msra.mxu0 0.0
    %1490 = vmatprep.subr.mxu0 0.0
    %1491 = vmatpush1.msra.mxu0 0.0
    %1492 = vmatprep.subr.mxu0 0.0
    %1493 = vmatpush1.msra.mxu0 0.0
    %1494 = vmatprep.mubr.f32.mxu0 0.0
    %1495 = vmatmul.mubr.f32.gmra.mrb[0].mxu0 %v1281
    %v1496 = vpop.f32.mrb[0].mxu0
    %v1497 = vadd.f32 0.0, %v1496
    %v1498 = vpop.f32.mrb[0].mxu0
    %1499 = vdwg.mxu0
    %v1501 = vrot.slane %v1497, 1
    %v1504 = vadd.f32 %v1355, %v1497
    %v1505 = vadd.f32 %v1356, %v1501
    %v1506 = vtanh.pop %v1504
    %v1507 = vtanh.pop %v1505
    %v1510 = vrot.slane %v1507, 7
    %v1511 = vsel %vm355, %v1510, %v1506
    %v1512 = vsel %vm115, %v1511, 0
    %1514 = vmatprep.subr.mxu0 0.0
    %1515 = vmatpush1.msra.mxu0 %v22
    %1516 = vmatprep.subr.mxu0 0.0
    %1517 = vmatpush1.msra.mxu0 %v23
    %1518 = vmatprep.subr.mxu0 0.0
    %1519 = vmatpush1.msra.mxu0 0.0
    %1520 = vmatprep.subr.mxu0 0.0
    %1521 = vmatpush1.msra.mxu0 0.0
    %1522 = vmatprep.subr.mxu0 0.0
    %1523 = vmatpush1.msra.mxu0 0.0
    %1524 = vmatprep.subr.mxu0 0.0
    %1525 = vmatpush1.msra.mxu0 0.0
    %1526 = vmatprep.subr.mxu0 0.0
    %1527 = vmatpush1.msra.mxu0 0.0
    %1528 = vmatprep.subr.mxu0 0.0
    %1529 = vmatpush1.msra.mxu0 0.0
    %1530 = vmatprep.subr.mxu0 0.0
    %1531 = vmatpush1.msra.mxu0 0.0
    %1532 = vmatprep.subr.mxu0 0.0
    %1533 = vmatpush1.msra.mxu0 0.0
    %1534 = vmatprep.subr.mxu0 0.0
    %1535 = vmatpush1.msra.mxu0 0.0
    %1536 = vmatprep.subr.mxu0 0.0
    %1537 = vmatpush1.msra.mxu0 0.0
    %1538 = vmatprep.subr.mxu0 0.0
    %1539 = vmatpush1.msra.mxu0 0.0
    %1540 = vmatprep.subr.mxu0 0.0
    %1541 = vmatpush1.msra.mxu0 0.0
    %1542 = vmatprep.subr.mxu0 0.0
    %1543 = vmatpush1.msra.mxu0 0.0
    %1544 = vmatprep.subr.mxu0 0.0
    %1545 = vmatpush1.msra.mxu0 0.0
    %1546 = vmatprep.subr.mxu0 0.0
    %1547 = vmatpush1.msra.mxu0 0.0
    %1548 = vmatprep.subr.mxu0 0.0
    %1549 = vmatpush1.msra.mxu0 0.0
    %1550 = vmatprep.subr.mxu0 0.0
    %1551 = vmatpush1.msra.mxu0 0.0
    %1552 = vmatprep.subr.mxu0 0.0
    %1553 = vmatpush1.msra.mxu0 0.0
    %1554 = vmatprep.subr.mxu0 0.0
    %1555 = vmatpush1.msra.mxu0 0.0
    %1556 = vmatprep.subr.mxu0 0.0
    %1557 = vmatpush1.msra.mxu0 0.0
    %1558 = vmatprep.subr.mxu0 0.0
    %1559 = vmatpush1.msra.mxu0 0.0
    %1560 = vmatprep.subr.mxu0 0.0
    %1561 = vmatpush1.msra.mxu0 0.0
    %1562 = vmatprep.subr.mxu0 0.0
    %1563 = vmatpush1.msra.mxu0 0.0
    %1564 = vmatprep.subr.mxu0 0.0
    %1565 = vmatpush1.msra.mxu0 0.0
    %1566 = vmatprep.subr.mxu0 0.0
    %1567 = vmatpush1.msra.mxu0 0.0
    %1568 = vmatprep.subr.mxu0 0.0
    %1569 = vmatpush1.msra.mxu0 0.0
    %1570 = vmatprep.subr.mxu0 0.0
    %1571 = vmatpush1.msra.mxu0 0.0
    %1572 = vmatprep.subr.mxu0 0.0
    %1573 = vmatpush1.msra.mxu0 0.0
    %1574 = vmatprep.subr.mxu0 0.0
    %1575 = vmatpush1.msra.mxu0 0.0
    %1576 = vmatprep.subr.mxu0 0.0
    %1577 = vmatpush1.msra.mxu0 0.0
    %1578 = vmatprep.mubr.f32.mxu0 0.0
    %1579 = vmatmul.mubr.f32.gmra.mrb[0].mxu0 %v1512
    %v1580 = vpop.f32.mrb[0].mxu0
    %v1581 = vadd.f32 0.0, %v1580
    %v1582 = vpop.f32.mrb[0].mxu0
    %1583 = vdwg.mxu0
    %v1584 = vadd.f32 %v1427, %v1581
    %v1585 = vtanh.pop %v1584
    %v1586 = vld [vmem:[#allocation2 + $0x6] sm:$0x1]
    %v1587 = vld [vmem:[#allocation2 + $0xe] sm:$0x1]
    %v1589 = vsel %vm115, %v1585, 0
    %1591 = vmatprep.subr.mxu0 0.0
    %1592 = vmatpush1.msra.mxu0 %v24
    %1593 = vmatprep.subr.mxu0 0.0
    %1594 = vmatpush1.msra.mxu0 %v25
    %1595 = vmatprep.subr.mxu0 0.0
    %1596 = vmatpush1.msra.mxu0 0.0
    %1597 = vmatprep.subr.mxu0 0.0
    %1598 = vmatpush1.msra.mxu0 0.0
    %1599 = vmatprep.subr.mxu0 0.0
    %1600 = vmatpush1.msra.mxu0 0.0
    %1601 = vmatprep.subr.mxu0 0.0
    %1602 = vmatpush1.msra.mxu0 0.0
    %1603 = vmatprep.subr.mxu0 0.0
    %1604 = vmatpush1.msra.mxu0 0.0
    %1605 = vmatprep.subr.mxu0 0.0
    %1606 = vmatpush1.msra.mxu0 0.0
    %1607 = vmatprep.subr.mxu0 0.0
    %1608 = vmatpush1.msra.mxu0 0.0
    %1609 = vmatprep.subr.mxu0 0.0
    %1610 = vmatpush1.msra.mxu0 0.0
    %1611 = vmatprep.subr.mxu0 0.0
    %1612 = vmatpush1.msra.mxu0 0.0
    %1613 = vmatprep.subr.mxu0 0.0
    %1614 = vmatpush1.msra.mxu0 0.0
    %1615 = vmatprep.subr.mxu0 0.0
    %1616 = vmatpush1.msra.mxu0 0.0
    %1617 = vmatprep.subr.mxu0 0.0
    %1618 = vmatpush1.msra.mxu0 0.0
    %1619 = vmatprep.subr.mxu0 0.0
    %1620 = vmatpush1.msra.mxu0 0.0
    %1621 = vmatprep.subr.mxu0 0.0
    %1622 = vmatpush1.msra.mxu0 0.0
    %1623 = vmatprep.subr.mxu0 0.0
    %1624 = vmatpush1.msra.mxu0 0.0
    %1625 = vmatprep.subr.mxu0 0.0
    %1626 = vmatpush1.msra.mxu0 0.0
    %1627 = vmatprep.subr.mxu0 0.0
    %1628 = vmatpush1.msra.mxu0 0.0
    %1629 = vmatprep.subr.mxu0 0.0
    %1630 = vmatpush1.msra.mxu0 0.0
    %1631 = vmatprep.subr.mxu0 0.0
    %1632 = vmatpush1.msra.mxu0 0.0
    %1633 = vmatprep.subr.mxu0 0.0
    %1634 = vmatpush1.msra.mxu0 0.0
    %1635 = vmatprep.subr.mxu0 0.0
    %1636 = vmatpush1.msra.mxu0 0.0
    %1637 = vmatprep.subr.mxu0 0.0
    %1638 = vmatpush1.msra.mxu0 0.0
    %1639 = vmatprep.subr.mxu0 0.0
    %1640 = vmatpush1.msra.mxu0 0.0
    %1641 = vmatprep.subr.mxu0 0.0
    %1642 = vmatpush1.msra.mxu0 0.0
    %1643 = vmatprep.subr.mxu0 0.0
    %1644 = vmatpush1.msra.mxu0 0.0
    %1645 = vmatprep.subr.mxu0 0.0
    %1646 = vmatpush1.msra.mxu0 0.0
    %1647 = vmatprep.subr.mxu0 0.0
    %1648 = vmatpush1.msra.mxu0 0.0
    %1649 = vmatprep.subr.mxu0 0.0
    %1650 = vmatpush1.msra.mxu0 0.0
    %1651 = vmatprep.subr.mxu0 0.0
    %1652 = vmatpush1.msra.mxu0 0.0
    %1653 = vmatprep.subr.mxu0 0.0
    %1654 = vmatpush1.msra.mxu0 0.0
    %1655 = vmatprep.mubr.f32.mxu0 0.0
    %1656 = vmatmul.mubr.f32.gmra.mrb[0].mxu0 %v1589
    %v1657 = vpop.f32.mrb[0].mxu0
    %v1658 = vadd.f32 %v35, %v1657
    %v1659 = vpop.f32.mrb[0].mxu0
    %1660 = vdwg.mxu0
    %1661 = vmatprep.subr.mxu0 0.0
    %1662 = vmatpush1.msra.mxu0 %v20
    %1663 = vmatprep.subr.mxu0 0.0
    %1664 = vmatpush1.msra.mxu0 %v21
    %1665 = vmatprep.subr.mxu0 0.0
    %1666 = vmatpush1.msra.mxu0 0.0
    %1667 = vmatprep.subr.mxu0 0.0
    %1668 = vmatpush1.msra.mxu0 0.0
    %1669 = vmatprep.subr.mxu0 0.0
    %1670 = vmatpush1.msra.mxu0 0.0
    %1671 = vmatprep.subr.mxu0 0.0
    %1672 = vmatpush1.msra.mxu0 0.0
    %1673 = vmatprep.subr.mxu0 0.0
    %1674 = vmatpush1.msra.mxu0 0.0
    %1675 = vmatprep.subr.mxu0 0.0
    %1676 = vmatpush1.msra.mxu0 0.0
    %1677 = vmatprep.subr.mxu0 0.0
    %1678 = vmatpush1.msra.mxu0 0.0
    %1679 = vmatprep.subr.mxu0 0.0
    %1680 = vmatpush1.msra.mxu0 0.0
    %1681 = vmatprep.subr.mxu0 0.0
    %1682 = vmatpush1.msra.mxu0 0.0
    %1683 = vmatprep.subr.mxu0 0.0
    %1684 = vmatpush1.msra.mxu0 0.0
    %1685 = vmatprep.subr.mxu0 0.0
    %1686 = vmatpush1.msra.mxu0 0.0
    %1687 = vmatprep.subr.mxu0 0.0
    %1688 = vmatpush1.msra.mxu0 0.0
    %1689 = vmatprep.subr.mxu0 0.0
    %1690 = vmatpush1.msra.mxu0 0.0
    %1691 = vmatprep.subr.mxu0 0.0
    %1692 = vmatpush1.msra.mxu0 0.0
    %1693 = vmatprep.subr.mxu0 0.0
    %1694 = vmatpush1.msra.mxu0 0.0
    %1695 = vmatprep.subr.mxu0 0.0
    %1696 = vmatpush1.msra.mxu0 0.0
    %1697 = vmatprep.subr.mxu0 0.0
    %1698 = vmatpush1.msra.mxu0 0.0
    %1699 = vmatprep.subr.mxu0 0.0
    %1700 = vmatpush1.msra.mxu0 0.0
    %1701 = vmatprep.subr.mxu0 0.0
    %1702 = vmatpush1.msra.mxu0 0.0
    %1703 = vmatprep.subr.mxu0 0.0
    %1704 = vmatpush1.msra.mxu0 0.0
    %1705 = vmatprep.subr.mxu0 0.0
    %1706 = vmatpush1.msra.mxu0 0.0
    %1707 = vmatprep.subr.mxu0 0.0
    %1708 = vmatpush1.msra.mxu0 0.0
    %1709 = vmatprep.subr.mxu0 0.0
    %1710 = vmatpush1.msra.mxu0 0.0
    %1711 = vmatprep.subr.mxu0 0.0
    %1712 = vmatpush1.msra.mxu0 0.0
    %1713 = vmatprep.subr.mxu0 0.0
    %1714 = vmatpush1.msra.mxu0 0.0
    %1715 = vmatprep.subr.mxu0 0.0
    %1716 = vmatpush1.msra.mxu0 0.0
    %1717 = vmatprep.subr.mxu0 0.0
    %1718 = vmatpush1.msra.mxu0 0.0
    %1719 = vmatprep.subr.mxu0 0.0
    %1720 = vmatpush1.msra.mxu0 0.0
    %1721 = vmatprep.subr.mxu0 0.0
    %1722 = vmatpush1.msra.mxu0 0.0
    %1723 = vmatprep.subr.mxu0 0.0
    %1724 = vmatpush1.msra.mxu0 0.0
    %1725 = vmatprep.mubr.f32.mxu0 0.0
    %1726 = vmatmul.mubr.f32.gmra.mrb[0].mxu0 %v1512
    %v1727 = vpop.f32.mrb[0].mxu0
    %v1728 = vadd.f32 0.0, %v1727
    %v1729 = vpop.f32.mrb[0].mxu0
    %1730 = vdwg.mxu0
    %v1732 = vrot.slane %v1728, 1
    %v1735 = vadd.f32 %v1586, %v1728
    %v1736 = vadd.f32 %v1587, %v1732
    %v1737 = vtanh.pop %v1735
    %v1738 = vtanh.pop %v1736
    %v1741 = vrot.slane %v1738, 7
    %v1742 = vsel %vm355, %v1741, %v1737
    %v1743 = vsel %vm115, %v1742, 0
    %1745 = vmatprep.subr.mxu0 0.0
    %1746 = vmatpush1.msra.mxu0 %v22
    %1747 = vmatprep.subr.mxu0 0.0
    %1748 = vmatpush1.msra.mxu0 %v23
    %1749 = vmatprep.subr.mxu0 0.0
    %1750 = vmatpush1.msra.mxu0 0.0
    %1751 = vmatprep.subr.mxu0 0.0
    %1752 = vmatpush1.msra.mxu0 0.0
    %1753 = vmatprep.subr.mxu0 0.0
    %1754 = vmatpush1.msra.mxu0 0.0
    %1755 = vmatprep.subr.mxu0 0.0
    %1756 = vmatpush1.msra.mxu0 0.0
    %1757 = vmatprep.subr.mxu0 0.0
    %1758 = vmatpush1.msra.mxu0 0.0
    %1759 = vmatprep.subr.mxu0 0.0
    %1760 = vmatpush1.msra.mxu0 0.0
    %1761 = vmatprep.subr.mxu0 0.0
    %1762 = vmatpush1.msra.mxu0 0.0
    %1763 = vmatprep.subr.mxu0 0.0
    %1764 = vmatpush1.msra.mxu0 0.0
    %1765 = vmatprep.subr.mxu0 0.0
    %1766 = vmatpush1.msra.mxu0 0.0
    %1767 = vmatprep.subr.mxu0 0.0
    %1768 = vmatpush1.msra.mxu0 0.0
    %1769 = vmatprep.subr.mxu0 0.0
    %1770 = vmatpush1.msra.mxu0 0.0
    %1771 = vmatprep.subr.mxu0 0.0
    %1772 = vmatpush1.msra.mxu0 0.0
    %1773 = vmatprep.subr.mxu0 0.0
    %1774 = vmatpush1.msra.mxu0 0.0
    %1775 = vmatprep.subr.mxu0 0.0
    %1776 = vmatpush1.msra.mxu0 0.0
    %1777 = vmatprep.subr.mxu0 0.0
    %1778 = vmatpush1.msra.mxu0 0.0
    %1779 = vmatprep.subr.mxu0 0.0
    %1780 = vmatpush1.msra.mxu0 0.0
    %1781 = vmatprep.subr.mxu0 0.0
    %1782 = vmatpush1.msra.mxu0 0.0
    %1783 = vmatprep.subr.mxu0 0.0
    %1784 = vmatpush1.msra.mxu0 0.0
    %1785 = vmatprep.subr.mxu0 0.0
    %1786 = vmatpush1.msra.mxu0 0.0
    %1787 = vmatprep.subr.mxu0 0.0
    %1788 = vmatpush1.msra.mxu0 0.0
    %1789 = vmatprep.subr.mxu0 0.0
    %1790 = vmatpush1.msra.mxu0 0.0
    %1791 = vmatprep.subr.mxu0 0.0
    %1792 = vmatpush1.msra.mxu0 0.0
    %1793 = vmatprep.subr.mxu0 0.0
    %1794 = vmatpush1.msra.mxu0 0.0
    %1795 = vmatprep.subr.mxu0 0.0
    %1796 = vmatpush1.msra.mxu0 0.0
    %1797 = vmatprep.subr.mxu0 0.0
    %1798 = vmatpush1.msra.mxu0 0.0
    %1799 = vmatprep.subr.mxu0 0.0
    %1800 = vmatpush1.msra.mxu0 0.0
    %1801 = vmatprep.subr.mxu0 0.0
    %1802 = vmatpush1.msra.mxu0 0.0
    %1803 = vmatprep.subr.mxu0 0.0
    %1804 = vmatpush1.msra.mxu0 0.0
    %1805 = vmatprep.subr.mxu0 0.0
    %1806 = vmatpush1.msra.mxu0 0.0
    %1807 = vmatprep.subr.mxu0 0.0
    %1808 = vmatpush1.msra.mxu0 0.0
    %1809 = vmatprep.mubr.f32.mxu0 0.0
    %1810 = vmatmul.mubr.f32.gmra.mrb[0].mxu0 %v1743
    %v1811 = vpop.f32.mrb[0].mxu0
    %v1812 = vadd.f32 0.0, %v1811
    %v1813 = vpop.f32.mrb[0].mxu0
    %1814 = vdwg.mxu0
    %v1815 = vadd.f32 %v1658, %v1812
    %v1816 = vtanh.pop %v1815
    %v1817 = vld [vmem:[#allocation2 + $0x7] sm:$0x1]
    %v1818 = vld [vmem:[#allocation2 + $0xf] sm:$0x1]
    %v1820 = vsel %vm115, %v1816, 0
    %1822 = vmatprep.subr.mxu0 0.0
    %1823 = vmatpush1.msra.mxu0 %v24
    %1824 = vmatprep.subr.mxu0 0.0
    %1825 = vmatpush1.msra.mxu0 %v25
    %1826 = vmatprep.subr.mxu0 0.0
    %1827 = vmatpush1.msra.mxu0 0.0
    %1828 = vmatprep.subr.mxu0 0.0
    %1829 = vmatpush1.msra.mxu0 0.0
    %1830 = vmatprep.subr.mxu0 0.0
    %1831 = vmatpush1.msra.mxu0 0.0
    %1832 = vmatprep.subr.mxu0 0.0
    %1833 = vmatpush1.msra.mxu0 0.0
    %1834 = vmatprep.subr.mxu0 0.0
    %1835 = vmatpush1.msra.mxu0 0.0
    %1836 = vmatprep.subr.mxu0 0.0
    %1837 = vmatpush1.msra.mxu0 0.0
    %1838 = vmatprep.subr.mxu0 0.0
    %1839 = vmatpush1.msra.mxu0 0.0
    %1840 = vmatprep.subr.mxu0 0.0
    %1841 = vmatpush1.msra.mxu0 0.0
    %1842 = vmatprep.subr.mxu0 0.0
    %1843 = vmatpush1.msra.mxu0 0.0
    %1844 = vmatprep.subr.mxu0 0.0
    %1845 = vmatpush1.msra.mxu0 0.0
    %1846 = vmatprep.subr.mxu0 0.0
    %1847 = vmatpush1.msra.mxu0 0.0
    %1848 = vmatprep.subr.mxu0 0.0
    %1849 = vmatpush1.msra.mxu0 0.0
    %1850 = vmatprep.subr.mxu0 0.0
    %1851 = vmatpush1.msra.mxu0 0.0
    %1852 = vmatprep.subr.mxu0 0.0
    %1853 = vmatpush1.msra.mxu0 0.0
    %1854 = vmatprep.subr.mxu0 0.0
    %1855 = vmatpush1.msra.mxu0 0.0
    %1856 = vmatprep.subr.mxu0 0.0
    %1857 = vmatpush1.msra.mxu0 0.0
    %1858 = vmatprep.subr.mxu0 0.0
    %1859 = vmatpush1.msra.mxu0 0.0
    %1860 = vmatprep.subr.mxu0 0.0
    %1861 = vmatpush1.msra.mxu0 0.0
    %1862 = vmatprep.subr.mxu0 0.0
    %1863 = vmatpush1.msra.mxu0 0.0
    %1864 = vmatprep.subr.mxu0 0.0
    %1865 = vmatpush1.msra.mxu0 0.0
    %1866 = vmatprep.subr.mxu0 0.0
    %1867 = vmatpush1.msra.mxu0 0.0
    %1868 = vmatprep.subr.mxu0 0.0
    %1869 = vmatpush1.msra.mxu0 0.0
    %1870 = vmatprep.subr.mxu0 0.0
    %1871 = vmatpush1.msra.mxu0 0.0
    %1872 = vmatprep.subr.mxu0 0.0
    %1873 = vmatpush1.msra.mxu0 0.0
    %1874 = vmatprep.subr.mxu0 0.0
    %1875 = vmatpush1.msra.mxu0 0.0
    %1876 = vmatprep.subr.mxu0 0.0
    %1877 = vmatpush1.msra.mxu0 0.0
    %1878 = vmatprep.subr.mxu0 0.0
    %1879 = vmatpush1.msra.mxu0 0.0
    %1880 = vmatprep.subr.mxu0 0.0
    %1881 = vmatpush1.msra.mxu0 0.0
    %1882 = vmatprep.subr.mxu0 0.0
    %1883 = vmatpush1.msra.mxu0 0.0
    %1884 = vmatprep.subr.mxu0 0.0
    %1885 = vmatpush1.msra.mxu0 0.0
    %1886 = vmatprep.mubr.f32.mxu0 0.0
    %1887 = vmatmul.mubr.f32.gmra.mrb[0].mxu0 %v1820
    %v1888 = vpop.f32.mrb[0].mxu0
    %v1889 = vadd.f32 %v35, %v1888
    %v1890 = vpop.f32.mrb[0].mxu0
    %1891 = vdwg.mxu0
    %1892 = vmatprep.subr.mxu0 0.0
    %1893 = vmatpush1.msra.mxu0 %v20
    %1894 = vmatprep.subr.mxu0 0.0
    %1895 = vmatpush1.msra.mxu0 %v21
    %1896 = vmatprep.subr.mxu0 0.0
    %1897 = vmatpush1.msra.mxu0 0.0
    %1898 = vmatprep.subr.mxu0 0.0
    %1899 = vmatpush1.msra.mxu0 0.0
    %1900 = vmatprep.subr.mxu0 0.0
    %1901 = vmatpush1.msra.mxu0 0.0
    %1902 = vmatprep.subr.mxu0 0.0
    %1903 = vmatpush1.msra.mxu0 0.0
    %1904 = vmatprep.subr.mxu0 0.0
    %1905 = vmatpush1.msra.mxu0 0.0
    %1906 = vmatprep.subr.mxu0 0.0
    %1907 = vmatpush1.msra.mxu0 0.0
    %1908 = vmatprep.subr.mxu0 0.0
    %1909 = vmatpush1.msra.mxu0 0.0
    %1910 = vmatprep.subr.mxu0 0.0
    %1911 = vmatpush1.msra.mxu0 0.0
    %1912 = vmatprep.subr.mxu0 0.0
    %1913 = vmatpush1.msra.mxu0 0.0
    %1914 = vmatprep.subr.mxu0 0.0
    %1915 = vmatpush1.msra.mxu0 0.0
    %1916 = vmatprep.subr.mxu0 0.0
    %1917 = vmatpush1.msra.mxu0 0.0
    %1918 = vmatprep.subr.mxu0 0.0
    %1919 = vmatpush1.msra.mxu0 0.0
    %1920 = vmatprep.subr.mxu0 0.0
    %1921 = vmatpush1.msra.mxu0 0.0
    %1922 = vmatprep.subr.mxu0 0.0
    %1923 = vmatpush1.msra.mxu0 0.0
    %1924 = vmatprep.subr.mxu0 0.0
    %1925 = vmatpush1.msra.mxu0 0.0
    %1926 = vmatprep.subr.mxu0 0.0
    %1927 = vmatpush1.msra.mxu0 0.0
    %1928 = vmatprep.subr.mxu0 0.0
    %1929 = vmatpush1.msra.mxu0 0.0
    %1930 = vmatprep.subr.mxu0 0.0
    %1931 = vmatpush1.msra.mxu0 0.0
    %1932 = vmatprep.subr.mxu0 0.0
    %1933 = vmatpush1.msra.mxu0 0.0
    %1934 = vmatprep.subr.mxu0 0.0
    %1935 = vmatpush1.msra.mxu0 0.0
    %1936 = vmatprep.subr.mxu0 0.0
    %1937 = vmatpush1.msra.mxu0 0.0
    %1938 = vmatprep.subr.mxu0 0.0
    %1939 = vmatpush1.msra.mxu0 0.0
    %1940 = vmatprep.subr.mxu0 0.0
    %1941 = vmatpush1.msra.mxu0 0.0
    %1942 = vmatprep.subr.mxu0 0.0
    %1943 = vmatpush1.msra.mxu0 0.0
    %1944 = vmatprep.subr.mxu0 0.0
    %1945 = vmatpush1.msra.mxu0 0.0
    %1946 = vmatprep.subr.mxu0 0.0
    %1947 = vmatpush1.msra.mxu0 0.0
    %1948 = vmatprep.subr.mxu0 0.0
    %1949 = vmatpush1.msra.mxu0 0.0
    %1950 = vmatprep.subr.mxu0 0.0
    %1951 = vmatpush1.msra.mxu0 0.0
    %1952 = vmatprep.subr.mxu0 0.0
    %1953 = vmatpush1.msra.mxu0 0.0
    %1954 = vmatprep.subr.mxu0 0.0
    %1955 = vmatpush1.msra.mxu0 0.0
    %1956 = vmatprep.mubr.f32.mxu0 0.0
    %1957 = vmatmul.mubr.f32.gmra.mrb[0].mxu0 %v1743
    %v1958 = vpop.f32.mrb[0].mxu0
    %v1959 = vadd.f32 0.0, %v1958
    %v1960 = vpop.f32.mrb[0].mxu0
    %1961 = vdwg.mxu0
    %v1963 = vrot.slane %v1959, 1
    %v1966 = vadd.f32 %v1817, %v1959
    %v1967 = vadd.f32 %v1818, %v1963
    %v1968 = vtanh.pop %v1966
    %v1969 = vtanh.pop %v1967
    %v1972 = vrot.slane %v1969, 7
    %v1973 = vsel %vm355, %v1972, %v1968
    %v1974 = vsel %vm115, %v1973, 0
    %1976 = vmatprep.subr.mxu0 0.0
    %1977 = vmatpush1.msra.mxu0 %v22
    %1978 = vmatprep.subr.mxu0 0.0
    %1979 = vmatpush1.msra.mxu0 %v23
    %1980 = vmatprep.subr.mxu0 0.0
    %1981 = vmatpush1.msra.mxu0 0.0
    %1982 = vmatprep.subr.mxu0 0.0
    %1983 = vmatpush1.msra.mxu0 0.0
    %1984 = vmatprep.subr.mxu0 0.0
    %1985 = vmatpush1.msra.mxu0 0.0
    %1986 = vmatprep.subr.mxu0 0.0
    %1987 = vmatpush1.msra.mxu0 0.0
    %1988 = vmatprep.subr.mxu0 0.0
    %1989 = vmatpush1.msra.mxu0 0.0
    %1990 = vmatprep.subr.mxu0 0.0
    %1991 = vmatpush1.msra.mxu0 0.0
    %1992 = vmatprep.subr.mxu0 0.0
    %1993 = vmatpush1.msra.mxu0 0.0
    %1994 = vmatprep.subr.mxu0 0.0
    %1995 = vmatpush1.msra.mxu0 0.0
    %1996 = vmatprep.subr.mxu0 0.0
    %1997 = vmatpush1.msra.mxu0 0.0
    %1998 = vmatprep.subr.mxu0 0.0
    %1999 = vmatpush1.msra.mxu0 0.0
    %2000 = vmatprep.subr.mxu0 0.0
    %2001 = vmatpush1.msra.mxu0 0.0
    %2002 = vmatprep.subr.mxu0 0.0
    %2003 = vmatpush1.msra.mxu0 0.0
    %2004 = vmatprep.subr.mxu0 0.0
    %2005 = vmatpush1.msra.mxu0 0.0
    %2006 = vmatprep.subr.mxu0 0.0
    %2007 = vmatpush1.msra.mxu0 0.0
    %2008 = vmatprep.subr.mxu0 0.0
    %2009 = vmatpush1.msra.mxu0 0.0
    %2010 = vmatprep.subr.mxu0 0.0
    %2011 = vmatpush1.msra.mxu0 0.0
    %2012 = vmatprep.subr.mxu0 0.0
    %2013 = vmatpush1.msra.mxu0 0.0
    %2014 = vmatprep.subr.mxu0 0.0
    %2015 = vmatpush1.msra.mxu0 0.0
    %2016 = vmatprep.subr.mxu0 0.0
    %2017 = vmatpush1.msra.mxu0 0.0
    %2018 = vmatprep.subr.mxu0 0.0
    %2019 = vmatpush1.msra.mxu0 0.0
    %2020 = vmatprep.subr.mxu0 0.0
    %2021 = vmatpush1.msra.mxu0 0.0
    %2022 = vmatprep.subr.mxu0 0.0
    %2023 = vmatpush1.msra.mxu0 0.0
    %2024 = vmatprep.subr.mxu0 0.0
    %2025 = vmatpush1.msra.mxu0 0.0
    %2026 = vmatprep.subr.mxu0 0.0
    %2027 = vmatpush1.msra.mxu0 0.0
    %2028 = vmatprep.subr.mxu0 0.0
    %2029 = vmatpush1.msra.mxu0 0.0
    %2030 = vmatprep.subr.mxu0 0.0
    %2031 = vmatpush1.msra.mxu0 0.0
    %2032 = vmatprep.subr.mxu0 0.0
    %2033 = vmatpush1.msra.mxu0 0.0
    %2034 = vmatprep.subr.mxu0 0.0
    %2035 = vmatpush1.msra.mxu0 0.0
    %2036 = vmatprep.subr.mxu0 0.0
    %2037 = vmatpush1.msra.mxu0 0.0
    %2038 = vmatprep.subr.mxu0 0.0
    %2039 = vmatpush1.msra.mxu0 0.0
    %2040 = vmatprep.mubr.f32.mxu0 0.0
    %2041 = vmatmul.mubr.f32.gmra.mrb[0].mxu0 %v1974
    %v2042 = vpop.f32.mrb[0].mxu0
    %v2043 = vadd.f32 0.0, %v2042
    %v2044 = vpop.f32.mrb[0].mxu0
    %2045 = vdwg.mxu0
    %v2046 = vadd.f32 %v1889, %v2043
    %v2047 = vtanh.pop %v2046
    %vm2049 = vcmask 123904
    %2050 = vst.msk [vmem:[#allocation3] sm:$0x3] %vm2049, %v1973
    %2051 = vst.msk [vmem:[#allocation4] sm:$0x3] %vm2049, %v2047
    // Predicated region
    $region14: #{tpu_custom_call.1} parent=1 // pred_check
      %p2052 = pneg %p12
    $region15: #{tpu_custom_call.1} parent=1 // pred_check_branch
      %2054 = sbr.rel (%p2052) target = $region17
    $region16: #{tpu_custom_call.1} parent=1 // pred_region
      %v2055 = vld [vmem:[%s1 + $0x38] sm:$0xff]
      %v2056 = vld [vmem:[%s1 + $0x40] sm:$0xff]
      %v2057 = vld [vmem:[%s1 + $0x5a] sm:$0x1]
      %v2058 = vld [vmem:[%s1 + $0x48] sm:$0xff]
      %v2059 = vld [vmem:[%s1 + $0x50] sm:$0xff]
      %v2060 = vld [vmem:[%s1 + $0x5b] sm:$0x1]
      %v2061 = vlaneseq
      %v2062 = vshrl.u32 %v2061, 7
      %v2063 = vsub.s32 0, %v2062
      %v2064 = vrot.slane %v2057, %v2063
      %v2066 = vsel %vm115, %v2047, 0
      %2068 = vmatprep.subr.mxu0 0.0
      %2069 = vmatpush1.msra.mxu0 %v2055
      %2070 = vmatprep.subr.mxu0 0.0
      %2071 = vmatpush1.msra.mxu0 %v2056
      %2072 = vmatprep.subr.mxu0 0.0
      %2073 = vmatpush1.msra.mxu0 0.0
      %2074 = vmatprep.subr.mxu0 0.0
      %2075 = vmatpush1.msra.mxu0 0.0
      %2076 = vmatprep.subr.mxu0 0.0
      %2077 = vmatpush1.msra.mxu0 0.0
      %2078 = vmatprep.subr.mxu0 0.0
      %2079 = vmatpush1.msra.mxu0 0.0
      %2080 = vmatprep.subr.mxu0 0.0
      %2081 = vmatpush1.msra.mxu0 0.0
      %2082 = vmatprep.subr.mxu0 0.0
      %2083 = vmatpush1.msra.mxu0 0.0
      %2084 = vmatprep.subr.mxu0 0.0
      %2085 = vmatpush1.msra.mxu0 0.0
      %2086 = vmatprep.subr.mxu0 0.0
      %2087 = vmatpush1.msra.mxu0 0.0
      %2088 = vmatprep.subr.mxu0 0.0
      %2089 = vmatpush1.msra.mxu0 0.0
      %2090 = vmatprep.subr.mxu0 0.0
      %2091 = vmatpush1.msra.mxu0 0.0
      %2092 = vmatprep.subr.mxu0 0.0
      %2093 = vmatpush1.msra.mxu0 0.0
      %2094 = vmatprep.subr.mxu0 0.0
      %2095 = vmatpush1.msra.mxu0 0.0
      %2096 = vmatprep.subr.mxu0 0.0
      %2097 = vmatpush1.msra.mxu0 0.0
      %2098 = vmatprep.subr.mxu0 0.0
      %2099 = vmatpush1.msra.mxu0 0.0
      %2100 = vmatprep.subr.mxu0 0.0
      %2101 = vmatpush1.msra.mxu0 0.0
      %2102 = vmatprep.subr.mxu0 0.0
      %2103 = vmatpush1.msra.mxu0 0.0
      %2104 = vmatprep.subr.mxu0 0.0
      %2105 = vmatpush1.msra.mxu0 0.0
      %2106 = vmatprep.subr.mxu0 0.0
      %2107 = vmatpush1.msra.mxu0 0.0
      %2108 = vmatprep.subr.mxu0 0.0
      %2109 = vmatpush1.msra.mxu0 0.0
      %2110 = vmatprep.subr.mxu0 0.0
      %2111 = vmatpush1.msra.mxu0 0.0
      %2112 = vmatprep.subr.mxu0 0.0
      %2113 = vmatpush1.msra.mxu0 0.0
      %2114 = vmatprep.subr.mxu0 0.0
      %2115 = vmatpush1.msra.mxu0 0.0
      %2116 = vmatprep.subr.mxu0 0.0
      %2117 = vmatpush1.msra.mxu0 0.0
      %2118 = vmatprep.subr.mxu0 0.0
      %2119 = vmatpush1.msra.mxu0 0.0
      %2120 = vmatprep.subr.mxu0 0.0
      %2121 = vmatpush1.msra.mxu0 0.0
      %2122 = vmatprep.subr.mxu0 0.0
      %2123 = vmatpush1.msra.mxu0 0.0
      %2124 = vmatprep.subr.mxu0 0.0
      %2125 = vmatpush1.msra.mxu0 0.0
      %2126 = vmatprep.subr.mxu0 0.0
      %2127 = vmatpush1.msra.mxu0 0.0
      %2128 = vmatprep.subr.mxu0 0.0
      %2129 = vmatpush1.msra.mxu0 0.0
      %2130 = vmatprep.subr.mxu0 0.0
      %2131 = vmatpush1.msra.mxu0 0.0
      %2132 = vmatprep.mubr.f32.mxu0 0.0
      %2133 = vmatmul.mubr.f32.gmra.mrb[0].mxu0 %v2066
      %v2134 = vpop.f32.mrb[0].mxu0
      %v2135 = vadd.f32 %v2064, %v2134
      %v2136 = vpop.f32.mrb[0].mxu0
      %2137 = vdwg.mxu0
      %v2138 = vmax.f32 %v2135, 0.0
      %v2139 = vlaneseq
      %v2140 = vshrl.u32 %v2139, 7
      %v2141 = vsub.s32 0, %v2140
      %v2142 = vrot.slane %v2060, %v2141
      %v2144 = vsel %vm115, %v2138, 0
      %2146 = vmatprep.subr.mxu0 0.0
      %2147 = vmatpush1.msra.mxu0 %v2058
      %2148 = vmatprep.subr.mxu0 0.0
      %2149 = vmatpush1.msra.mxu0 %v2059
      %2150 = vmatprep.subr.mxu0 0.0
      %2151 = vmatpush1.msra.mxu0 0.0
      %2152 = vmatprep.subr.mxu0 0.0
      %2153 = vmatpush1.msra.mxu0 0.0
      %2154 = vmatprep.subr.mxu0 0.0
      %2155 = vmatpush1.msra.mxu0 0.0
      %2156 = vmatprep.subr.mxu0 0.0
      %2157 = vmatpush1.msra.mxu0 0.0
      %2158 = vmatprep.subr.mxu0 0.0
      %2159 = vmatpush1.msra.mxu0 0.0
      %2160 = vmatprep.subr.mxu0 0.0
      %2161 = vmatpush1.msra.mxu0 0.0
      %2162 = vmatprep.subr.mxu0 0.0
      %2163 = vmatpush1.msra.mxu0 0.0
      %2164 = vmatprep.subr.mxu0 0.0
      %2165 = vmatpush1.msra.mxu0 0.0
      %2166 = vmatprep.subr.mxu0 0.0
      %2167 = vmatpush1.msra.mxu0 0.0
      %2168 = vmatprep.subr.mxu0 0.0
      %2169 = vmatpush1.msra.mxu0 0.0
      %2170 = vmatprep.subr.mxu0 0.0
      %2171 = vmatpush1.msra.mxu0 0.0
      %2172 = vmatprep.subr.mxu0 0.0
      %2173 = vmatpush1.msra.mxu0 0.0
      %2174 = vmatprep.subr.mxu0 0.0
      %2175 = vmatpush1.msra.mxu0 0.0
      %2176 = vmatprep.subr.mxu0 0.0
      %2177 = vmatpush1.msra.mxu0 0.0
      %2178 = vmatprep.subr.mxu0 0.0
      %2179 = vmatpush1.msra.mxu0 0.0
      %2180 = vmatprep.subr.mxu0 0.0
      %2181 = vmatpush1.msra.mxu0 0.0
      %2182 = vmatprep.subr.mxu0 0.0
      %2183 = vmatpush1.msra.mxu0 0.0
      %2184 = vmatprep.subr.mxu0 0.0
      %2185 = vmatpush1.msra.mxu0 0.0
      %2186 = vmatprep.subr.mxu0 0.0
      %2187 = vmatpush1.msra.mxu0 0.0
      %2188 = vmatprep.subr.mxu0 0.0
      %2189 = vmatpush1.msra.mxu0 0.0
      %2190 = vmatprep.subr.mxu0 0.0
      %2191 = vmatpush1.msra.mxu0 0.0
      %2192 = vmatprep.subr.mxu0 0.0
      %2193 = vmatpush1.msra.mxu0 0.0
      %2194 = vmatprep.subr.mxu0 0.0
      %2195 = vmatpush1.msra.mxu0 0.0
      %2196 = vmatprep.subr.mxu0 0.0
      %2197 = vmatpush1.msra.mxu0 0.0
      %2198 = vmatprep.subr.mxu0 0.0
      %2199 = vmatpush1.msra.mxu0 0.0
      %2200 = vmatprep.subr.mxu0 0.0
      %2201 = vmatpush1.msra.mxu0 0.0
      %2202 = vmatprep.subr.mxu0 0.0
      %2203 = vmatpush1.msra.mxu0 0.0
      %2204 = vmatprep.subr.mxu0 0.0
      %2205 = vmatpush1.msra.mxu0 0.0
      %2206 = vmatprep.subr.mxu0 0.0
      %2207 = vmatpush1.msra.mxu0 0.0
      %2208 = vmatprep.subr.mxu0 0.0
      %2209 = vmatpush1.msra.mxu0 0.0
      %2210 = vmatprep.mubr.f32.mxu0 0.0
      %2211 = vmatmul.mubr.f32.gmra.mrb[0].mxu0 %v2144
      %v2212 = vpop.f32.mrb[0].mxu0
      %v2213 = vadd.f32 %v2142, %v2212
      %v2214 = vpop.f32.mrb[0].mxu0
      %2215 = vdwg.mxu0
      %vm2216 = vcmask 33792
      %2217 = vst.msk [vmem:[#allocation5] sm:$0x3] %vm2216, %v2213
    $region17: #{tpu_custom_call.1} parent=1 // pred_fallthru
      _
    // Predicated region
    $region18: #{tpu_custom_call.1} parent=1 // pred_check
      _
    $region19: #{tpu_custom_call.1} parent=1 // pred_check_branch
      %2219 = sbr.rel (0) target = $region21
    $region20: #{tpu_custom_call.1} parent=1 // pred_region
      %s2221 = ssub.s32 32, 32
      %2222 = vsyncadd [#allocation6], %s2221
      %s2224 = sshll.u32 [#allocation5], 4
      %s2225 = int_to_ptr.vmem [resolvable:$true] %s2224
      %2227 = dma.vmem_to_hbm [thread:$0]  %s2225, 32, %s2, [#allocation6]
    $region21: #{tpu_custom_call.1} parent=1 // pred_fallthru
      _
    // Predicated region
    $region22: #{tpu_custom_call.1} parent=1 // pred_check
      _
    $region23: #{tpu_custom_call.1} parent=1 // pred_check_branch
      %2229 = sbr.rel (0) target = $region25
    $region24: #{tpu_custom_call.1} parent=1 // pred_region
      %2230 = dma.done [#allocation6], 32
    $region25: #{tpu_custom_call.1} parent=1 // pred_fallthru
      _
    %2231 = vsyncpa [#allocation6], 1

</llo_original>
